<compile_context>
chip_gen: v6e
topology: v6e:2x2x1
jax: 0.10.0
libtpu: 0.0.40
codegen_flags: <defaults>
</compile_context>

<pallas_src>
import math

import jax
import jax.numpy as jnp
from jax.experimental import pallas as pl
from jax.experimental.pallas import tpu as pltpu


def _ardm_kernel(x_ref, m_ref, w1x_ref, w1m_ref, b1_ref, wt_ref, w2_ref,
                 b2_ref, out_ref, h_ref):
    """Fused ARDM forward: masking, timestep reduction, 2-layer MLP net.

    Grid = (batch_blocks, nout_tiles). The hidden activation `h` is computed
    once per batch block (at the first nout tile, gated by pl.when) and cached
    in bf16 VMEM scratch; every nout tile then does one h @ w2_tile matmul
    while BlockSpec double-buffers the streaming w2 / b2 / out tiles.
    NOTE: the nout axis must stay last (sequential, "arbitrary") for the
    h-caching to be correct.
    """
    j = pl.program_id(1)

    @pl.when(j == 0)
    def _():
        x = x_ref[...]                                   # (bm, nin) bf16
        m = m_ref[...]                                   # (bm, nin) bf16 (0/1)
        masked_x = m * x                                 # mask * x (exact)
        # timesteps = sum of mask over all non-batch dims -> (bm, 1), f32 accum
        # so counts stay exact for large nin.
        timesteps = jnp.sum(m.astype(jnp.float32), axis=-1, keepdims=True)
        # First layer: two MXU dots (no concat copy), f32 accumulation.
        pre = (jnp.dot(masked_x, w1x_ref[...], preferred_element_type=jnp.float32)
               + jnp.dot(m, w1m_ref[...], preferred_element_type=jnp.float32)
               + b1_ref[...]
               + timesteps * wt_ref[...])                # wt pre-scaled by 1/nin
        h_ref[...] = jnp.maximum(pre, 0.0).astype(h_ref.dtype)   # bf16 cache

    out_ref[...] = (
        jnp.dot(h_ref[...], w2_ref[...], preferred_element_type=jnp.float32)
        + b2_ref[...]
    ).astype(out_ref.dtype)


def _round_up(x, m):
    return (x + m - 1) // m * m


def _pick_tile(n, candidates=(2048, 1024, 512, 256, 128)):
    """Largest lane-dense tile (multiple of 128) that evenly divides n."""
    for t in candidates:
        if n % t == 0:
            return t
    return n  # fallback: full width (block == array dim is always legal)


class ARDMPallas:
    """JAX/Pallas re-implementation of ARDM.forward with a synthetic MLP net."""

    def __init__(self, data_shape, num_params_per_dist, hidden=128, seed=0):
        self.data_shape = tuple(data_shape)               # (C, H, W)
        self.num_params_per_dist = num_params_per_dist
        self.nin = int(math.prod(self.data_shape))
        self.hidden = hidden
        self.nout = self.nin * num_params_per_dist
        # Lane-dense output width: pad nout to a multiple of 128 so output
        # stores are unmasked full-width vst (largest store-bandwidth lever).
        self.nout_pad = _round_up(self.nout, 128)

        # Deterministic parameter init (synthetic net weights).
        k = jax.random.PRNGKey(seed)
        k1, k2, k3, k4 = jax.random.split(k, 4)
        s = 0.02
        # bf16 weights halve HBM->VMEM traffic; MXU accumulates in f32.
        self.w1x = (jax.random.normal(k1, (self.nin, hidden), jnp.float32) * s
                    ).astype(jnp.bfloat16)
        self.w1m = (jax.random.normal(k2, (self.nin, hidden), jnp.float32) * s
                    ).astype(jnp.bfloat16)
        self.b1 = jnp.zeros((1, hidden), jnp.float32)
        # Fold the 1/nin timestep normalization into wt at init (free cleanup).
        self.wt = (jax.random.normal(k3, (1, hidden), jnp.float32) * s
                   ) / float(self.nin)
        w2 = (jax.random.normal(k4, (hidden, self.nout), jnp.float32) * s
              ).astype(jnp.bfloat16)
        self.w2 = jnp.pad(w2, ((0, 0), (0, self.nout_pad - self.nout)))
        self.b2 = jnp.zeros((1, self.nout_pad), jnp.float32)

        # jit fuses the layout plumbing and removes per-call dispatch overhead;
        # weights are closed over as constants.
        self._forward = jax.jit(self._forward_impl)

    def _forward_impl(self, x, mask):
        B = x.shape[0]
        C, H, W = self.data_shape
        nin, hidden = self.nin, self.hidden
        nout, nout_pad = self.nout, self.nout_pad

        # bf16 activations halve the x/mask HBM bytes for this memory-bound
        # kernel; mask values (0/1) stay exact in bf16.
        x_flat = x.reshape(B, nin).astype(jnp.bfloat16)
        m_flat = mask.reshape(B, nin).astype(jnp.bfloat16)

        # Batch blocking:
        #   * at least 2 batch blocks so dimension_semantics "parallel" can
        #     shard axis 0 across both v7x TensorCores,
        #   * bm capped at 128 (256 for B >= 256 to fill the 256-wide MXU and
        #     halve w2 re-streaming),
        #   * total padding bounded to <= 8 rows per block.
        cap = 256 if B >= 256 else 128
        b_pad0 = _round_up(max(B, 1), 8)
        nblk = max(2, -(-b_pad0 // cap))
        bm = _round_up(-(-b_pad0 // nblk), 8)
        b_pad = nblk * bm
        if b_pad != B:
            pad = ((0, b_pad - B), (0, 0))
            x_flat = jnp.pad(x_flat, pad)
            m_flat = jnp.pad(m_flat, pad)

        tn = _pick_tile(nout_pad)                 # lane-dense output tile
        grid = (b_pad // bm, nout_pad // tn)

        # Explicit VMEM budget from block sizes (default scoped limit can be
        # too small once nin grows). Blocks are double-buffered by Pallas.
        # TODO(synk): for very large nin on v7x (64 MiB VMEM) the full-nin
        # x/m/w1 blocks need a K grid axis; not needed at these sizes.
        dbl = 2
        blk_bytes = (
            dbl * bm * nin * 2 * 2            # x, mask blocks (bf16)
            + dbl * nin * hidden * 2 * 2      # w1x, w1m blocks (bf16, resident)
            + dbl * hidden * tn * 2           # w2 tile (bf16)
            + dbl * (2 * hidden + tn) * 4     # b1, wt, b2 (f32)
            + dbl * bm * tn * 4               # out tile (f32)
            + bm * hidden * 2)                # h scratch (bf16)
        vmem_limit = int(min(64 * 2**20, max(2 * blk_bytes, 16 * 2**20)))

        flops = 2 * b_pad * (2 * nin * hidden + hidden * nout_pad)
        bytes_accessed = (
            2 * b_pad * nin * 2               # x, mask (bf16)
            + 2 * nin * hidden * 2            # w1x + w1m (bf16)
            + hidden * nout_pad * 2           # w2 (bf16)
            + (2 * hidden + nout_pad) * 4     # b1, wt, b2 (f32)
            + b_pad * nout_pad * 4)           # thetas out (f32)
        cost = pl.CostEstimate(flops=flops, transcendentals=0,
                               bytes_accessed=bytes_accessed)

        thetas_flat = pl.pallas_call(
            _ardm_kernel,
            out_shape=jax.ShapeDtypeStruct((b_pad, nout_pad), jnp.float32),
            grid_spec=pltpu.PrefetchScalarGridSpec(
                num_scalar_prefetch=0,
                grid=grid,
                in_specs=[
                    pl.BlockSpec((bm, nin), lambda i, j: (i, 0)),        # x
                    pl.BlockSpec((bm, nin), lambda i, j: (i, 0)),        # mask
                    pl.BlockSpec((nin, hidden), lambda i, j: (0, 0)),    # w1x
                    pl.BlockSpec((nin, hidden), lambda i, j: (0, 0)),    # w1m
                    pl.BlockSpec((1, hidden), lambda i, j: (0, 0)),      # b1
                    pl.BlockSpec((1, hidden), lambda i, j: (0, 0)),      # wt
                    pl.BlockSpec((hidden, tn), lambda i, j: (0, j)),     # w2
                    pl.BlockSpec((1, tn), lambda i, j: (0, j)),          # b2
                ],
                out_specs=pl.BlockSpec((bm, tn), lambda i, j: (i, j)),
                scratch_shapes=[pltpu.VMEM((bm, hidden), jnp.bfloat16)],  # h
            ),
            compiler_params=pltpu.CompilerParams(
                dimension_semantics=("parallel", "arbitrary"),
                vmem_limit_bytes=vmem_limit),
            cost_estimate=cost,
        )(x_flat, m_flat, self.w1x, self.w1m, self.b1, self.wt,
          self.w2, self.b2)

        # Drop batch + nout padding (never remove this slice: padded rows carry
        # ReLU(b1)@w2+b2 garbage). thetas -> (B, num_params_per_dist*C, H, W).
        # NaN assert from the PyTorch module intentionally dropped (host sync);
        # use pl.debug_check / interpret mode for debugging instead.
        thetas_flat = thetas_flat[:B, :nout]
        return thetas_flat.reshape(B, self.num_params_per_dist * C, H, W)

    def __call__(self, x, mask):
        return self._forward(x, mask)


if __name__ == "__main__":
    key = jax.random.PRNGKey(0)
    kx, km = jax.random.split(key)

    B, C, Hs, Ws = 2, 4, 16, 16
    num_params_per_dist = 2

    x = jax.random.normal(kx, (B, C, Hs, Ws), jnp.float32)
    mask = (jax.random.uniform(km, (B, C, Hs, Ws)) > 0.5).astype(jnp.float32)

    model = ARDMPallas(data_shape=[C, Hs, Ws],
                       num_params_per_dist=num_params_per_dist,
                       hidden=128, seed=0)

    thetas = model(x, mask)
    jax.block_until_ready(thetas)

    assert thetas.shape == (B, num_params_per_dist * C, Hs, Ws), thetas.shape
    assert bool(jnp.all(jnp.isfinite(thetas)))
    print("KERNEL_OK")
</pallas_src>

<mosaic_0001>
module attributes {stable_mosaic.version = 11 : i64} {
  func.func @_ardm_kernel(%arg0: i32, %arg1: i32, %arg2: memref<8x1024xbf16, #tpu.memory_space<vmem>>, %arg3: memref<8x1024xbf16, #tpu.memory_space<vmem>>, %arg4: memref<1024x128xbf16, #tpu.memory_space<vmem>>, %arg5: memref<1024x128xbf16, #tpu.memory_space<vmem>>, %arg6: memref<1x128xf32, #tpu.memory_space<vmem>>, %arg7: memref<1x128xf32, #tpu.memory_space<vmem>>, %arg8: memref<128x2048xbf16, #tpu.memory_space<vmem>>, %arg9: memref<1x2048xf32, #tpu.memory_space<vmem>>, %arg10: memref<8x2048xf32, #tpu.memory_space<vmem>>, %arg11: memref<8x128xbf16, #tpu.memory_space<vmem>>) attributes {dimension_semantics = [#tpu.dimension_semantics<parallel>, #tpu.dimension_semantics<arbitrary>], iteration_bounds = array<i64: 2, 1>, scalar_prefetch = 0 : i64, scratch_operands = 1 : i64, tpu.core_type = #tpu.core_type<tc>, window_params = [{transform_indices = @transform_0, window_bounds = array<i64: 8, 1024>}, {transform_indices = @transform_1, window_bounds = array<i64: 8, 1024>}, {pipeline_mode = #tpu.pipeline_mode<synchronous>, transform_indices = @transform_2, window_bounds = array<i64: 1024, 128>}, {pipeline_mode = #tpu.pipeline_mode<synchronous>, transform_indices = @transform_3, window_bounds = array<i64: 1024, 128>}, {pipeline_mode = #tpu.pipeline_mode<synchronous>, transform_indices = @transform_4, window_bounds = array<i64: 1, 128>}, {pipeline_mode = #tpu.pipeline_mode<synchronous>, transform_indices = @transform_5, window_bounds = array<i64: 1, 128>}, {transform_indices = @transform_6, window_bounds = array<i64: 128, 2048>}, {transform_indices = @transform_7, window_bounds = array<i64: 1, 2048>}, {transform_indices = @transform_8, window_bounds = array<i64: 8, 2048>}]} {
    %c0_i32 = arith.constant 0 : i32
    %0 = arith.cmpi eq, %arg1, %c0_i32 : i32
    %1 = arith.extui %0 : i1 to i32
    %c0_i32_0 = arith.constant 0 : i32
    %2 = arith.cmpi ne, %1, %c0_i32_0 : i32
    scf.if %2 {
      %c0_8 = arith.constant 0 : index
      %c0_9 = arith.constant 0 : index
      %10 = vector.load %arg2[%c0_8, %c0_9] : memref<8x1024xbf16, #tpu.memory_space<vmem>>, vector<8x1024xbf16>
      %c0_10 = arith.constant 0 : index
      %c0_11 = arith.constant 0 : index
      %11 = vector.load %arg3[%c0_10, %c0_11] : memref<8x1024xbf16, #tpu.memory_space<vmem>>, vector<8x1024xbf16>
      %12 = arith.mulf %11, %10 : vector<8x1024xbf16>
      %13 = arith.extf %11 : vector<8x1024xbf16> to vector<8x1024xf32>
      %cst_12 = arith.constant dense<0.000000e+00> : vector<8xf32>
      %14 = vector.multi_reduction <add>, %13, %cst_12 [1] : vector<8x1024xf32> to vector<8xf32>
      %15 = vector.shape_cast %14 : vector<8xf32> to vector<8x1xf32>
      %c0_13 = arith.constant 0 : index
      %c0_14 = arith.constant 0 : index
      %16 = vector.load %arg4[%c0_13, %c0_14] : memref<1024x128xbf16, #tpu.memory_space<vmem>>, vector<1024x128xbf16>
      %cst_15 = arith.constant dense<0.000000e+00> : vector<8x128xf32>
      %17 = tpu.matmul %12, %16, %cst_15 {dimension_numbers = #tpu.dot_dimension_numbers<[1], [0], [0], [1], [0, 0, 1, 1], [], []>} : vector<8x1024xbf16>, vector<1024x128xbf16>, vector<8x128xf32> -> vector<8x128xf32>
      %c0_16 = arith.constant 0 : index
      %c0_17 = arith.constant 0 : index
      %18 = vector.load %arg5[%c0_16, %c0_17] : memref<1024x128xbf16, #tpu.memory_space<vmem>>, vector<1024x128xbf16>
      %cst_18 = arith.constant dense<0.000000e+00> : vector<8x128xf32>
      %19 = tpu.matmul %11, %18, %cst_18 {dimension_numbers = #tpu.dot_dimension_numbers<[1], [0], [0], [1], [0, 0, 1, 1], [], []>} : vector<8x1024xbf16>, vector<1024x128xbf16>, vector<8x128xf32> -> vector<8x128xf32>
      %20 = arith.addf %17, %19 : vector<8x128xf32>
      %c0_19 = arith.constant 0 : index
      %c0_20 = arith.constant 0 : index
      %21 = vector.load %arg6[%c0_19, %c0_20] : memref<1x128xf32, #tpu.memory_space<vmem>>, vector<1x128xf32>
      %22 = vector.broadcast %21 : vector<1x128xf32> to vector<8x128xf32>
      %23 = arith.addf %20, %22 : vector<8x128xf32>
      %c0_21 = arith.constant 0 : index
      %c0_22 = arith.constant 0 : index
      %24 = vector.load %arg7[%c0_21, %c0_22] : memref<1x128xf32, #tpu.memory_space<vmem>>, vector<1x128xf32>
      %25 = vector.broadcast %15 : vector<8x1xf32> to vector<8x128xf32>
      %26 = vector.broadcast %24 : vector<1x128xf32> to vector<8x128xf32>
      %27 = arith.mulf %25, %26 : vector<8x128xf32>
      %28 = arith.addf %23, %27 : vector<8x128xf32>
      %cst_23 = arith.constant 0.000000e+00 : f32
      %29 = vector.broadcast %cst_23 : f32 to vector<8x128xf32>
      %30 = arith.maximumf %28, %29 : vector<8x128xf32>
      %31 = arith.truncf %30 : vector<8x128xf32> to vector<8x128xbf16>
      %c0_24 = arith.constant 0 : index
      %c0_25 = arith.constant 0 : index
      %32 = vector.load %arg11[%c0_24, %c0_25] : memref<8x128xbf16, #tpu.memory_space<vmem>>, vector<8x128xbf16>
      tpu.vector_store %arg11[%c0_24, %c0_25], %31 {strides = array<i32>} : memref<8x128xbf16, #tpu.memory_space<vmem>>, vector<8x128xbf16>,
    } else {
    }
    %c0 = arith.constant 0 : index
    %c0_1 = arith.constant 0 : index
    %3 = vector.load %arg11[%c0, %c0_1] : memref<8x128xbf16, #tpu.memory_space<vmem>>, vector<8x128xbf16>
    %c0_2 = arith.constant 0 : index
    %c0_3 = arith.constant 0 : index
    %4 = vector.load %arg8[%c0_2, %c0_3] : memref<128x2048xbf16, #tpu.memory_space<vmem>>, vector<128x2048xbf16>
    %cst = arith.constant dense<0.000000e+00> : vector<8x2048xf32>
    %5 = tpu.matmul %3, %4, %cst {dimension_numbers = #tpu.dot_dimension_numbers<[1], [0], [0], [1], [0, 0, 1, 1], [], []>} : vector<8x128xbf16>, vector<128x2048xbf16>, vector<8x2048xf32> -> vector<8x2048xf32>
    %c0_4 = arith.constant 0 : index
    %c0_5 = arith.constant 0 : index
    %6 = vector.load %arg9[%c0_4, %c0_5] : memref<1x2048xf32, #tpu.memory_space<vmem>>, vector<1x2048xf32>
    %7 = vector.broadcast %6 : vector<1x2048xf32> to vector<8x2048xf32>
    %8 = arith.addf %5, %7 : vector<8x2048xf32>
    %c0_6 = arith.constant 0 : index
    %c0_7 = arith.constant 0 : index
    %9 = vector.load %arg10[%c0_6, %c0_7] : memref<8x2048xf32, #tpu.memory_space<vmem>>, vector<8x2048xf32>
    tpu.vector_store %arg10[%c0_6, %c0_7], %8 {strides = array<i32>} : memref<8x2048xf32, #tpu.memory_space<vmem>>, vector<8x2048xf32>,
    return
  }
  func.func @transform_0(%arg0: i32, %arg1: i32) -> (i32, i32) {
    %c0_i32 = arith.constant 0 : i32
    %c0_i32_0 = arith.constant 0 : i32
    return %arg0, %c0_i32 : i32, i32
  }
  func.func @transform_1(%arg0: i32, %arg1: i32) -> (i32, i32) {
    %c0_i32 = arith.constant 0 : i32
    %c0_i32_0 = arith.constant 0 : i32
    return %arg0, %c0_i32 : i32, i32
  }
  func.func @transform_2(%arg0: i32, %arg1: i32) -> (i32, i32) {
    %c0_i32 = arith.constant 0 : i32
    %c0_i32_0 = arith.constant 0 : i32
    %c0_i32_1 = arith.constant 0 : i32
    return %c0_i32, %c0_i32_0 : i32, i32
  }
  func.func @transform_3(%arg0: i32, %arg1: i32) -> (i32, i32) {
    %c0_i32 = arith.constant 0 : i32
    %c0_i32_0 = arith.constant 0 : i32
    %c0_i32_1 = arith.constant 0 : i32
    return %c0_i32, %c0_i32_0 : i32, i32
  }
  func.func @transform_4(%arg0: i32, %arg1: i32) -> (i32, i32) {
    %c0_i32 = arith.constant 0 : i32
    %c0_i32_0 = arith.constant 0 : i32
    %c0_i32_1 = arith.constant 0 : i32
    return %c0_i32, %c0_i32_0 : i32, i32
  }
  func.func @transform_5(%arg0: i32, %arg1: i32) -> (i32, i32) {
    %c0_i32 = arith.constant 0 : i32
    %c0_i32_0 = arith.constant 0 : i32
    %c0_i32_1 = arith.constant 0 : i32
    return %c0_i32, %c0_i32_0 : i32, i32
  }
  func.func @transform_6(%arg0: i32, %arg1: i32) -> (i32, i32) {
    %c0_i32 = arith.constant 0 : i32
    %c0_i32_0 = arith.constant 0 : i32
    return %c0_i32, %arg1 : i32, i32
  }
  func.func @transform_7(%arg0: i32, %arg1: i32) -> (i32, i32) {
    %c0_i32 = arith.constant 0 : i32
    %c0_i32_0 = arith.constant 0 : i32
    return %c0_i32, %arg1 : i32, i32
  }
  func.func @transform_8(%arg0: i32, %arg1: i32) -> (i32, i32) {
    %c0_i32 = arith.constant 0 : i32
    return %arg0, %arg1 : i32, i32
  }
}

</mosaic_0001>

<llo_original>
// kernel: _forward_impl.1
$region0: #{_forward_impl.1}
  #allocation0 [shape = 'u32[]', space=smem, size = 0x4, offset = 0x4, fixed_abs, tag = 'smem constant byte address 0x4 - core index']
  #allocation1 [shape = 'u32[144,128]{1,0:T(1,128)}', space=vmem, size = 0x12000, scoped, tag = 'internal scratch']
  #allocation2 [shape = 'bf16[8,128]{1,0:T(8,128)(2,1)}', space=vmem, size = 0x800, scoped, tag = 'scratch operand']
  %s0 = inlined_call_operand.vmem [shape: bf16[16,1024], index: 0, kind: input, shape index: {}]
  %s1 = inlined_call_operand.vmem [shape: bf16[16,1024], index: 1, kind: input, shape index: {}]
  %s2 = inlined_call_operand.hbm [shape: bf16[1024,128], index: 2, kind: input, shape index: {}]
  %s3 = inlined_call_operand.vmem [shape: bf16[1024,128], index: 3, kind: input, shape index: {}]
  %s4 = inlined_call_operand.vmem [shape: f32[1,128], index: 4, kind: input, shape index: {}]
  %s5 = inlined_call_operand.vmem [shape: f32[1,128], index: 5, kind: input, shape index: {}]
  %s6 = inlined_call_operand.hbm [shape: bf16[128,2048], index: 6, kind: input, shape index: {}]
  %s7 = inlined_call_operand.vmem [shape: f32[1,2048], index: 7, kind: input, shape index: {}]
  %s8 = inlined_call_operand.vmem [shape: f32[16,2048], index: 8, kind: output, shape index: {}]
  %s9 = sld [smem:[#allocation0]]
  $region77: #{_forward_impl.1} parent=0
    _
  %s11 = ssub.s32 1, %s9
  %s12 = scalar_select 0, %s11, %s9
  $region1: #{_forward_impl.1} parent=0
    #allocation3 [shape = 'u8[262144]{0}', space=vmem, size = 0x40000, scoped, tag = 'input window, operand 2, single buffered']
    #allocation4 [shape = 's32[2]{0}', space=sflag, size = 0x8, scoped, tag = 'scoped memory for _forward_impl.1']
    #allocation5 [shape = 'u8[524288]{0}', space=vmem, size = 0x80000, scoped, tag = 'input window, operand 6, single buffered']
    #allocation6 [shape = 's32[1]{0}', space=sflag, size = 0x4, scoped, tag = 'scoped memory for _forward_impl.1']
    %13 = vsyncpa [#allocation4], 0
    %14 = vsyncpa [#allocation6], 0
    loop: start=0, step=1, limit=4
    $region2: #{_forward_impl.1} parent=1 // loop_pre_header
      _
    $region3: #{_forward_impl.1} parent=1 // loop_header
      %s16 = sphi 0, %s20
      %p17 = scmp.ge.s32.totalorder %s16, 4
      %s23 = sphi 0, %s35
      %s24 = sphi 0, %s31
      %s25 = sphi 0, %s23
      %s26 = sphi 0, %s24
      %s27 = sphi 0, %s25
      %s28 = sphi 0, %s26
      %s38 = sphi 0, %s40
      %s41 = sphi 0, %s38
      %s42 = sphi 0, %s41
      %s58 = sphi 0, %s42
      %s64 = sphi 0, %s66
      %s67 = sphi 0, %s64
      %s68 = sphi 0, %s67
      %s84 = sphi 0, %s68
      %s88 = sphi 0, %s88
      %s90 = sphi 0, %s88
      %s91 = sphi 0, %s90
      %s105 = sphi 0, %s91
      %s109 = sphi 0, %s109
      %s111 = sphi 0, %s109
      %s112 = sphi 0, %s111
      %s126 = sphi 0, %s112
      %s130 = sphi 0, %s130
      %s132 = sphi 0, %s130
      %s133 = sphi 0, %s132
      %s147 = sphi 0, %s133
      %s151 = sphi 0, %s151
      %s153 = sphi 0, %s151
      %s154 = sphi 0, %s153
      %s168 = sphi 0, %s154
      %s174 = sphi 0, %s176
      %s177 = sphi 0, %s174
      %s178 = sphi 0, %s177
      %s194 = sphi 0, %s178
      %s200 = sphi 0, %s202
      %s203 = sphi 0, %s200
      %s204 = sphi 0, %s203
      %s220 = sphi 0, %s204
      %s228 = sphi 0, %s230
      %s231 = sphi 0, %s228
      %s232 = sphi 0, %s231
      %s248 = sphi 0, %s232
    $region4: #{_forward_impl.1} parent=1 // loop_header_branch
      %19 = sbr.rel (%p17) target = $region8
    $region5: #{_forward_impl.1} parent=1 // loop_body
      %s21 = ssub.s32 %s16, 1
      %s22 = ssub.s32 %s16, 2
      %s29 = sadd.s32 1, %s24
      %p30 = scmp.ge.s32.totalorder %s29, 1
      %s31 = scalar_select %p30, 0, %s29
      %s32 = sadd.s32 1, %s23
      %s33 = scalar_select %p30, %s32, %s23
      %p34 = scmp.ge.s32.totalorder %s33, 2
      %s35 = scalar_select %p34, 0, %s33
      %s36 = ssub.s32 %s23, %s35
      %p37 = scmp.eq.s32.totalorder %s36, 0
      %s39 = sadd.s32 %s38, 1
      %s40 = scalar_select %p37, %s38, %s39
      %p43 = pneg %p37
      %p44 = scmp.eq.s32.totalorder %s16, 1
      %p45 = por %p43, %p44
      %p46 = scmp.ne.s32.totalorder %s38, %s41
      %p47 = scmp.eq.s32.totalorder %s16, 0
      %p48 = por %p46, %p47
      %p49 = scmp.ne.s32.totalorder %s38, %s41
      %p50 = scmp.eq.s32.totalorder %s21, 1
      %p51 = por %p49, %p50
      %p52 = scmp.ne.s32.totalorder %s41, %s42
      %p53 = scmp.eq.s32.totalorder %s21, 0
      %p54 = por %p52, %p53
      %p55 = scmp.ne.s32.totalorder %s41, %s42
      %p56 = scmp.eq.s32.totalorder %s22, 1
      %p57 = por %p55, %p56
      %p59 = scmp.ne.s32.totalorder %s42, %s58
      %p60 = scmp.eq.s32.totalorder %s22, 0
      %p61 = por %p59, %p60
      %s62 = ssub.s32 %s23, %s35
      %p63 = scmp.eq.s32.totalorder %s62, 0
      %s65 = sadd.s32 %s64, 1
      %s66 = scalar_select %p63, %s64, %s65
      %p69 = pneg %p63
      %p70 = scmp.eq.s32.totalorder %s16, 1
      %p71 = por %p69, %p70
      %p72 = scmp.ne.s32.totalorder %s64, %s67
      %p73 = scmp.eq.s32.totalorder %s16, 0
      %p74 = por %p72, %p73
      %p75 = scmp.ne.s32.totalorder %s64, %s67
      %p76 = scmp.eq.s32.totalorder %s21, 1
      %p77 = por %p75, %p76
      %p78 = scmp.ne.s32.totalorder %s67, %s68
      %p79 = scmp.eq.s32.totalorder %s21, 0
      %p80 = por %p78, %p79
      %p81 = scmp.ne.s32.totalorder %s67, %s68
      %p82 = scmp.eq.s32.totalorder %s22, 1
      %p83 = por %p81, %p82
      %p85 = scmp.ne.s32.totalorder %s68, %s84
      %p86 = scmp.eq.s32.totalorder %s22, 0
      %p87 = por %p85, %p86
      %s89 = sadd.s32 %s88, 1
      %p92 = scmp.eq.s32.totalorder %s16, 1
      %p93 = scmp.ne.s32.totalorder %s88, %s90
      %p94 = scmp.eq.s32.totalorder %s16, 0
      %p95 = por %p93, %p94
      %p96 = scmp.ne.s32.totalorder %s88, %s90
      %p97 = scmp.eq.s32.totalorder %s21, 1
      %p98 = por %p96, %p97
      %p99 = scmp.ne.s32.totalorder %s90, %s91
      %p100 = scmp.eq.s32.totalorder %s21, 0
      %p101 = por %p99, %p100
      %p102 = scmp.ne.s32.totalorder %s90, %s91
      %p103 = scmp.eq.s32.totalorder %s22, 1
      %p104 = por %p102, %p103
      %p106 = scmp.ne.s32.totalorder %s91, %s105
      %p107 = scmp.eq.s32.totalorder %s22, 0
      %p108 = por %p106, %p107
      %s110 = sadd.s32 %s109, 1
      %p113 = scmp.eq.s32.totalorder %s16, 1
      %p114 = scmp.ne.s32.totalorder %s109, %s111
      %p115 = scmp.eq.s32.totalorder %s16, 0
      %p116 = por %p114, %p115
      %p117 = scmp.ne.s32.totalorder %s109, %s111
      %p118 = scmp.eq.s32.totalorder %s21, 1
      %p119 = por %p117, %p118
      %p120 = scmp.ne.s32.totalorder %s111, %s112
      %p121 = scmp.eq.s32.totalorder %s21, 0
      %p122 = por %p120, %p121
      %p123 = scmp.ne.s32.totalorder %s111, %s112
      %p124 = scmp.eq.s32.totalorder %s22, 1
      %p125 = por %p123, %p124
      %p127 = scmp.ne.s32.totalorder %s112, %s126
      %p128 = scmp.eq.s32.totalorder %s22, 0
      %p129 = por %p127, %p128
      %s131 = sadd.s32 %s130, 1
      %p134 = scmp.eq.s32.totalorder %s16, 1
      %p135 = scmp.ne.s32.totalorder %s130, %s132
      %p136 = scmp.eq.s32.totalorder %s16, 0
      %p137 = por %p135, %p136
      %p138 = scmp.ne.s32.totalorder %s130, %s132
      %p139 = scmp.eq.s32.totalorder %s21, 1
      %p140 = por %p138, %p139
      %p141 = scmp.ne.s32.totalorder %s132, %s133
      %p142 = scmp.eq.s32.totalorder %s21, 0
      %p143 = por %p141, %p142
      %p144 = scmp.ne.s32.totalorder %s132, %s133
      %p145 = scmp.eq.s32.totalorder %s22, 1
      %p146 = por %p144, %p145
      %p148 = scmp.ne.s32.totalorder %s133, %s147
      %p149 = scmp.eq.s32.totalorder %s22, 0
      %p150 = por %p148, %p149
      %s152 = sadd.s32 %s151, 1
      %p155 = scmp.eq.s32.totalorder %s16, 1
      %p156 = scmp.ne.s32.totalorder %s151, %s153
      %p157 = scmp.eq.s32.totalorder %s16, 0
      %p158 = por %p156, %p157
      %p159 = scmp.ne.s32.totalorder %s151, %s153
      %p160 = scmp.eq.s32.totalorder %s21, 1
      %p161 = por %p159, %p160
      %p162 = scmp.ne.s32.totalorder %s153, %s154
      %p163 = scmp.eq.s32.totalorder %s21, 0
      %p164 = por %p162, %p163
      %p165 = scmp.ne.s32.totalorder %s153, %s154
      %p166 = scmp.eq.s32.totalorder %s22, 1
      %p167 = por %p165, %p166
      %p169 = scmp.ne.s32.totalorder %s154, %s168
      %p170 = scmp.eq.s32.totalorder %s22, 0
      %p171 = por %p169, %p170
      %s172 = ssub.s32 %s24, %s31
      %p173 = scmp.eq.s32.totalorder %s172, 0
      %s175 = sadd.s32 %s174, 1
      %s176 = scalar_select %p173, %s174, %s175
      %p179 = pneg %p173
      %p180 = scmp.eq.s32.totalorder %s16, 1
      %p181 = por %p179, %p180
      %p182 = scmp.ne.s32.totalorder %s174, %s177
      %p183 = scmp.eq.s32.totalorder %s16, 0
      %p184 = por %p182, %p183
      %p185 = scmp.ne.s32.totalorder %s174, %s177
      %p186 = scmp.eq.s32.totalorder %s21, 1
      %p187 = por %p185, %p186
      %p188 = scmp.ne.s32.totalorder %s177, %s178
      %p189 = scmp.eq.s32.totalorder %s21, 0
      %p190 = por %p188, %p189
      %p191 = scmp.ne.s32.totalorder %s177, %s178
      %p192 = scmp.eq.s32.totalorder %s22, 1
      %p193 = por %p191, %p192
      %p195 = scmp.ne.s32.totalorder %s178, %s194
      %p196 = scmp.eq.s32.totalorder %s22, 0
      %p197 = por %p195, %p196
      %s198 = ssub.s32 %s24, %s31
      %p199 = scmp.eq.s32.totalorder %s198, 0
      %s201 = sadd.s32 %s200, 1
      %s202 = scalar_select %p199, %s200, %s201
      %p205 = pneg %p199
      %p206 = scmp.eq.s32.totalorder %s16, 1
      %p207 = por %p205, %p206
      %p208 = scmp.ne.s32.totalorder %s200, %s203
      %p209 = scmp.eq.s32.totalorder %s16, 0
      %p210 = por %p208, %p209
      %p211 = scmp.ne.s32.totalorder %s200, %s203
      %p212 = scmp.eq.s32.totalorder %s21, 1
      %p213 = por %p211, %p212
      %p214 = scmp.ne.s32.totalorder %s203, %s204
      %p215 = scmp.eq.s32.totalorder %s21, 0
      %p216 = por %p214, %p215
      %p217 = scmp.ne.s32.totalorder %s203, %s204
      %p218 = scmp.eq.s32.totalorder %s22, 1
      %p219 = por %p217, %p218
      %p221 = scmp.ne.s32.totalorder %s204, %s220
      %p222 = scmp.eq.s32.totalorder %s22, 0
      %p223 = por %p221, %p222
      %s224 = ssub.s32 %s23, %s35
      %s225 = ssub.s32 %s24, %s31
      %s226 = sor.u32 %s224, %s225
      %p227 = scmp.eq.s32.totalorder %s226, 0
      %s229 = sadd.s32 %s228, 1
      %s230 = scalar_select %p227, %s228, %s229
      %p233 = pneg %p227
      %p234 = scmp.eq.s32.totalorder %s16, 1
      %p235 = por %p233, %p234
      %p236 = scmp.ne.s32.totalorder %s228, %s231
      %p237 = scmp.eq.s32.totalorder %s16, 0
      %p238 = por %p236, %p237
      %p239 = scmp.ne.s32.totalorder %s228, %s231
      %p240 = scmp.eq.s32.totalorder %s21, 1
      %p241 = por %p239, %p240
      %p242 = scmp.ne.s32.totalorder %s231, %s232
      %p243 = scmp.eq.s32.totalorder %s21, 0
      %p244 = por %p242, %p243
      %p245 = scmp.ne.s32.totalorder %s231, %s232
      %p246 = scmp.eq.s32.totalorder %s22, 1
      %p247 = por %p245, %p246
      %p249 = scmp.ne.s32.totalorder %s232, %s248
      %p250 = scmp.eq.s32.totalorder %s22, 0
      %p251 = por %p249, %p250
      %p252 = scmp.le.s32.totalorder 1, %s16
      %p253 = scmp.lt.s32.totalorder %s16, 3
      %p254 = pnand %p252, %p253
      %p255 = pneg %p254
      // Predicated region
      $region9: #{_forward_impl.1} parent=5 // pred_check
        _
      $region10: #{_forward_impl.1} parent=5 // pred_check_branch
        %257 = sbr.rel (%p254) target = $region12
      $region11: #{_forward_impl.1} parent=5 // pred_region
        %s258 = ssub.s32 %s16, 1
        // Predicated region
        $region13: #{_forward_impl.1} parent=11 // pred_check
          %p259 = pneg %p101
        $region14: #{_forward_impl.1} parent=11 // pred_check_branch
          %261 = sbr.rel (%p259) target = $region16
        $region15: #{_forward_impl.1} parent=11 // pred_region
          %s263 = ssub.s32 8192, 8192
          %264 = vsyncadd [#allocation4], %s263
          %s265 = sshll.u32 [#allocation3], 4
          %s266 = int_to_ptr.vmem [resolvable:$true] %s265
          %271 = dma.hbm_to_vmem [thread:$0]  %s2, 8192, %s266, [#allocation4], 64, 64, 4
        $region16: #{_forward_impl.1} parent=11 // pred_fallthru
          _
        // Predicated region
        $region17: #{_forward_impl.1} parent=11 // pred_check
          %p272 = pneg %p122
        $region18: #{_forward_impl.1} parent=11 // pred_check_branch
          %274 = sbr.rel (%p272) target = $region20
        $region19: #{_forward_impl.1} parent=11 // pred_region
          _
        $region20: #{_forward_impl.1} parent=11 // pred_fallthru
          _
        // Predicated region
        $region21: #{_forward_impl.1} parent=11 // pred_check
          %p275 = pneg %p143
        $region22: #{_forward_impl.1} parent=11 // pred_check_branch
          %277 = sbr.rel (%p275) target = $region24
        $region23: #{_forward_impl.1} parent=11 // pred_region
          _
        $region24: #{_forward_impl.1} parent=11 // pred_fallthru
          _
        // Predicated region
        $region25: #{_forward_impl.1} parent=11 // pred_check
          %p278 = pneg %p164
        $region26: #{_forward_impl.1} parent=11 // pred_check_branch
          %280 = sbr.rel (%p278) target = $region28
        $region27: #{_forward_impl.1} parent=11 // pred_region
          _
        $region28: #{_forward_impl.1} parent=11 // pred_fallthru
          _
        // Predicated region
        $region29: #{_forward_impl.1} parent=11 // pred_check
          %p281 = pneg %p190
        $region30: #{_forward_impl.1} parent=11 // pred_check_branch
          %283 = sbr.rel (%p281) target = $region32
        $region31: #{_forward_impl.1} parent=11 // pred_region
          %s284 = smul.u32 16, %s26
          %s286 = ssub.s32 16384, 16384
          %287 = vsyncadd [#allocation6], %s286
          %s288 = smul.addr %s284, 64
          %s289 = scalar_lea.hbm %s6, %s288
          %s290 = sshll.u32 [#allocation5], 4
          %s291 = int_to_ptr.vmem [resolvable:$true] %s290
          %296 = dma.hbm_to_vmem [thread:$0]  %s289, 16384, %s291, [#allocation6], 1024, 1024, 64
        $region32: #{_forward_impl.1} parent=11 // pred_fallthru
          _
        // Predicated region
        $region33: #{_forward_impl.1} parent=11 // pred_check
          %p297 = pneg %p216
        $region34: #{_forward_impl.1} parent=11 // pred_check_branch
          %299 = sbr.rel (%p297) target = $region36
        $region35: #{_forward_impl.1} parent=11 // pred_region
          %s300 = smul.u32 16, %s26
          %p301 = scmp.lt.s32.totalorder %s300, 15
          %s302 = scalar_select %p301, %s300, 15
          %s303 = scalar_lea.vmem %s7, %s302
          %s304 = smul.u32 16, %s26
        $region36: #{_forward_impl.1} parent=11 // pred_fallthru
          _
      $region12: #{_forward_impl.1} parent=5 // pred_fallthru
        _
      %p305 = scmp.lt.s32.totalorder %s16, 2
      // Predicated region
      $region37: #{_forward_impl.1} parent=5 // pred_check
        %p306 = pneg %p305
      $region38: #{_forward_impl.1} parent=5 // pred_check_branch
        %308 = sbr.rel (%p306) target = $region40
      $region39: #{_forward_impl.1} parent=5 // pred_region
        // Predicated region
        $region41: #{_forward_impl.1} parent=39 // pred_check
          %p309 = pneg %p48
        $region42: #{_forward_impl.1} parent=39 // pred_check_branch
          %311 = sbr.rel (%p309) target = $region44
        $region43: #{_forward_impl.1} parent=39 // pred_region
          %p312 = scmp.lt.s32.totalorder %s23, 1
          %s313 = scalar_select %p312, %s23, 1
          %s314 = smul.addr %s313, 8
          %s315 = smul.addr %s314, 4
          %s316 = scalar_lea.vmem %s0, %s315
        $region44: #{_forward_impl.1} parent=39 // pred_fallthru
          _
        // Predicated region
        $region45: #{_forward_impl.1} parent=39 // pred_check
          %p317 = pneg %p74
        $region46: #{_forward_impl.1} parent=39 // pred_check_branch
          %319 = sbr.rel (%p317) target = $region48
        $region47: #{_forward_impl.1} parent=39 // pred_region
          %p320 = scmp.lt.s32.totalorder %s23, 1
          %s321 = scalar_select %p320, %s23, 1
          %s322 = smul.addr %s321, 8
          %s323 = smul.addr %s322, 4
          %s324 = scalar_lea.vmem %s1, %s323
        $region48: #{_forward_impl.1} parent=39 // pred_fallthru
          _
      $region40: #{_forward_impl.1} parent=5 // pred_fallthru
        _
      %p325 = scmp.le.s32.totalorder 1, %s16
      %p326 = scmp.lt.s32.totalorder %s16, 3
      %p327 = pnand %p325, %p326
      %p328 = pneg %p327
      // Predicated region
      $region49: #{_forward_impl.1} parent=5 // pred_check
        _
      $region50: #{_forward_impl.1} parent=5 // pred_check_branch
        %330 = sbr.rel (%p327) target = $region52
      $region51: #{_forward_impl.1} parent=5 // pred_region
        %s331 = ssub.s32 %s16, 1
        // Predicated region
        $region53: #{_forward_impl.1} parent=51 // pred_check
          %p332 = pneg %p101
        $region54: #{_forward_impl.1} parent=51 // pred_check_branch
          %334 = sbr.rel (%p332) target = $region56
        $region55: #{_forward_impl.1} parent=51 // pred_region
          %335 = dma.done [#allocation4], 8192
        $region56: #{_forward_impl.1} parent=51 // pred_fallthru
          _
        // Predicated region
        $region57: #{_forward_impl.1} parent=51 // pred_check
          %p336 = pneg %p190
        $region58: #{_forward_impl.1} parent=51 // pred_check_branch
          %338 = sbr.rel (%p336) target = $region60
        $region59: #{_forward_impl.1} parent=51 // pred_region
          %339 = dma.done [#allocation6], 16384
        $region60: #{_forward_impl.1} parent=51 // pred_fallthru
          _
        %p340 = scmp.lt.s32.totalorder %s25, 1
        %s341 = scalar_select %p340, %s25, 1
        %s342 = smul.addr %s341, 8
        %s343 = smul.addr %s342, 4
        %s344 = scalar_lea.vmem %s0, %s343
        %p345 = pneg %p54
        %p346 = pneg %p51
        %p347 = scmp.lt.s32.totalorder %s25, 1
        %s348 = scalar_select %p347, %s25, 1
        %s349 = smul.addr %s348, 8
        %s350 = smul.addr %s349, 4
        %s351 = scalar_lea.vmem %s1, %s350
        %p352 = pneg %p80
        %p353 = pneg %p77
        %p354 = pneg %p101
        %p355 = pneg %p98
        %p356 = pneg %p122
        %p357 = pneg %p119
        %p358 = pneg %p143
        %p359 = pneg %p140
        %p360 = pneg %p164
        %p361 = pneg %p161
        %p362 = pneg %p190
        %p363 = pneg %p187
        %s364 = smul.u32 16, %s26
        %p365 = scmp.lt.s32.totalorder %s364, 15
        %s366 = scalar_select %p365, %s364, 15
        %s367 = scalar_lea.vmem %s7, %s366
        %p368 = pneg %p216
        %p369 = pneg %p213
        %p370 = pneg %p244
        %p371 = pneg %p241
        %s372 = smul.u32 16, %s26
        %p373 = scmp.lt.s32.totalorder %s25, 1
        %s374 = scalar_select %p373, %s25, 1
        %p375 = scmp.lt.s32.totalorder %s372, 15
        %s376 = scalar_select %p375, %s372, 15
        %s377 = smul.addr %s374, 16
        %s378 = sadd.s32 %s376, %s377
        %s379 = smul.addr %s378, 8
        %s380 = scalar_lea.vmem %s8, %s379
        %p381 = scmp.lt.s32.totalorder %s25, 1
        %s382 = scalar_select %p381, %s25, 1
        %s383 = smul.addr %s382, 8
        %s384 = smul.addr %s383, 4
        %s385 = scalar_lea.vmem %s0, %s384
        %p386 = scmp.lt.s32.totalorder %s25, 1
        %s387 = scalar_select %p386, %s25, 1
        %s388 = smul.addr %s387, 8
        %s389 = smul.addr %s388, 4
        %s390 = scalar_lea.vmem %s1, %s389
        %s391 = smul.u32 16, %s26
        %s392 = smul.u32 16, %s26
        %p393 = scmp.lt.s32.totalorder %s392, 15
        %s394 = scalar_select %p393, %s392, 15
        %s395 = scalar_lea.vmem %s7, %s394
        %s396 = smul.u32 16, %s26
        %s397 = smul.u32 16, %s26
        %p398 = scmp.lt.s32.totalorder %s25, 1
        %s399 = scalar_select %p398, %s25, 1
        %p400 = scmp.lt.s32.totalorder %s397, 15
        %s401 = scalar_select %p400, %s397, 15
        %s402 = smul.addr %s399, 16
        %s403 = sadd.s32 %s401, %s402
        %s404 = smul.addr %s403, 8
        %s405 = scalar_lea.vmem %s8, %s404
        %s406 = smul.u32 16, %s26
        %p408 = scmp.eq.s32.totalorder %s26, 0
        // Predicated region
        $region61: #{_forward_impl.1} parent=51 // pred_check
          %p409 = pneg %p408
        $region62: #{_forward_impl.1} parent=51 // pred_check_branch
          %411 = sbr.rel (%p409) target = $region64
        $region63: #{_forward_impl.1} parent=51 // pred_region
          %v412 = vld [vmem:[%s385] sm:$0xff]
          %v413 = vld [vmem:[%s385 + $0x8] sm:$0xff]
          %v414 = vld [vmem:[%s385 + $0x10] sm:$0xff]
          %v415 = vld [vmem:[%s385 + $0x18] sm:$0xff]
          %v416 = vld [vmem:[%s390] sm:$0xff]
          %v417 = vld [vmem:[%s390 + $0x8] sm:$0xff]
          %v418 = vld [vmem:[%s390 + $0x10] sm:$0xff]
          %v419 = vld [vmem:[%s390 + $0x18] sm:$0xff]
          %v420 = vmul.bf16 %v416, %v412
          %v421 = vmul.bf16 %v417, %v413
          %v422 = vmul.bf16 %v418, %v414
          %v423 = vmul.bf16 %v419, %v415
          %v424 = vunpack.c.l.bf16 %v416
          %v425 = vunpack.c.h.bf16 %v416
          %v426 = vunpack.c.l.bf16 %v417
          %v427 = vunpack.c.h.bf16 %v417
          %v428 = vunpack.c.l.bf16 %v418
          %v429 = vunpack.c.h.bf16 %v418
          %v430 = vunpack.c.l.bf16 %v419
          %v431 = vunpack.c.h.bf16 %v419
          %v432 = vadd.f32 %v424, %v425
          %v433 = vadd.f32 %v432, %v426
          %v434 = vadd.f32 %v433, %v427
          %v435 = vadd.f32 %v434, %v428
          %v436 = vadd.f32 %v435, %v429
          %v437 = vadd.f32 %v436, %v430
          %v438 = vadd.f32 %v437, %v431
          %439 = vadd.xlane.f32.xlu0 %v438
          %v440 = vpop.xlane.xlu0 %439
          %v441 = vld [vmem:[#allocation3] sm:$0xf]
          %v442 = vld [vmem:[#allocation3 + $0x4] sm:$0xf]
          %v443 = vld [vmem:[#allocation3 + $0x8] sm:$0xf]
          %v444 = vld [vmem:[#allocation3 + $0xc] sm:$0xf]
          %v445 = vld [vmem:[#allocation3 + $0x10] sm:$0xf]
          %v446 = vld [vmem:[#allocation3 + $0x14] sm:$0xf]
          %v447 = vld [vmem:[#allocation3 + $0x18] sm:$0xf]
          %v448 = vld [vmem:[#allocation3 + $0x1c] sm:$0xf]
          %v449 = vld [vmem:[#allocation3 + $0x20] sm:$0xf]
          %v450 = vld [vmem:[#allocation3 + $0x24] sm:$0xf]
          %v451 = vld [vmem:[#allocation3 + $0x28] sm:$0xf]
          %v452 = vld [vmem:[#allocation3 + $0x2c] sm:$0xf]
          %v453 = vld [vmem:[#allocation3 + $0x30] sm:$0xf]
          %v454 = vld [vmem:[#allocation3 + $0x34] sm:$0xf]
          %v455 = vld [vmem:[#allocation3 + $0x38] sm:$0xf]
          %v456 = vld [vmem:[#allocation3 + $0x3c] sm:$0xf]
          %v457 = vld [vmem:[#allocation3 + $0x40] sm:$0xf]
          %v458 = vld [vmem:[#allocation3 + $0x44] sm:$0xf]
          %v459 = vld [vmem:[#allocation3 + $0x48] sm:$0xf]
          %v460 = vld [vmem:[#allocation3 + $0x4c] sm:$0xf]
          %v461 = vld [vmem:[#allocation3 + $0x50] sm:$0xf]
          %v462 = vld [vmem:[#allocation3 + $0x54] sm:$0xf]
          %v463 = vld [vmem:[#allocation3 + $0x58] sm:$0xf]
          %v464 = vld [vmem:[#allocation3 + $0x5c] sm:$0xf]
          %v465 = vld [vmem:[#allocation3 + $0x60] sm:$0xf]
          %v466 = vld [vmem:[#allocation3 + $0x64] sm:$0xf]
          %v467 = vld [vmem:[#allocation3 + $0x68] sm:$0xf]
          %v468 = vld [vmem:[#allocation3 + $0x6c] sm:$0xf]
          %v469 = vld [vmem:[#allocation3 + $0x70] sm:$0xf]
          %v470 = vld [vmem:[#allocation3 + $0x74] sm:$0xf]
          %v471 = vld [vmem:[#allocation3 + $0x78] sm:$0xf]
          %v472 = vld [vmem:[#allocation3 + $0x7c] sm:$0xf]
          %v473 = vld [vmem:[#allocation3 + $0x80] sm:$0xf]
          %v474 = vld [vmem:[#allocation3 + $0x84] sm:$0xf]
          %v475 = vld [vmem:[#allocation3 + $0x88] sm:$0xf]
          %v476 = vld [vmem:[#allocation3 + $0x8c] sm:$0xf]
          %v477 = vld [vmem:[#allocation3 + $0x90] sm:$0xf]
          %v478 = vld [vmem:[#allocation3 + $0x94] sm:$0xf]
          %v479 = vld [vmem:[#allocation3 + $0x98] sm:$0xf]
          %v480 = vld [vmem:[#allocation3 + $0x9c] sm:$0xf]
          %v481 = vld [vmem:[#allocation3 + $0xa0] sm:$0xf]
          %v482 = vld [vmem:[#allocation3 + $0xa4] sm:$0xf]
          %v483 = vld [vmem:[#allocation3 + $0xa8] sm:$0xf]
          %v484 = vld [vmem:[#allocation3 + $0xac] sm:$0xf]
          %v485 = vld [vmem:[#allocation3 + $0xb0] sm:$0xf]
          %v486 = vld [vmem:[#allocation3 + $0xb4] sm:$0xf]
          %v487 = vld [vmem:[#allocation3 + $0xb8] sm:$0xf]
          %v488 = vld [vmem:[#allocation3 + $0xbc] sm:$0xf]
          %v489 = vld [vmem:[#allocation3 + $0xc0] sm:$0xf]
          %v490 = vld [vmem:[#allocation3 + $0xc4] sm:$0xf]
          %v491 = vld [vmem:[#allocation3 + $0xc8] sm:$0xf]
          %v492 = vld [vmem:[#allocation3 + $0xcc] sm:$0xf]
          %v493 = vld [vmem:[#allocation3 + $0xd0] sm:$0xf]
          %v494 = vld [vmem:[#allocation3 + $0xd4] sm:$0xf]
          %v495 = vld [vmem:[#allocation3 + $0xd8] sm:$0xf]
          %v496 = vld [vmem:[#allocation3 + $0xdc] sm:$0xf]
          %v497 = vld [vmem:[#allocation3 + $0xe0] sm:$0xf]
          %v498 = vld [vmem:[#allocation3 + $0xe4] sm:$0xf]
          %v499 = vld [vmem:[#allocation3 + $0xe8] sm:$0xf]
          %v500 = vld [vmem:[#allocation3 + $0xec] sm:$0xf]
          %v501 = vld [vmem:[#allocation3 + $0xf0] sm:$0xf]
          %v502 = vld [vmem:[#allocation3 + $0xf4] sm:$0xf]
          %v503 = vld [vmem:[#allocation3 + $0xf8] sm:$0xf]
          %v504 = vld [vmem:[#allocation3 + $0xfc] sm:$0xf]
          %v505 = vld [vmem:[#allocation3 + $0x100] sm:$0xf]
          %v506 = vld [vmem:[#allocation3 + $0x104] sm:$0xf]
          %v507 = vld [vmem:[#allocation3 + $0x108] sm:$0xf]
          %v508 = vld [vmem:[#allocation3 + $0x10c] sm:$0xf]
          %v509 = vld [vmem:[#allocation3 + $0x110] sm:$0xf]
          %v510 = vld [vmem:[#allocation3 + $0x114] sm:$0xf]
          %v511 = vld [vmem:[#allocation3 + $0x118] sm:$0xf]
          %v512 = vld [vmem:[#allocation3 + $0x11c] sm:$0xf]
          %v513 = vld [vmem:[#allocation3 + $0x120] sm:$0xf]
          %v514 = vld [vmem:[#allocation3 + $0x124] sm:$0xf]
          %v515 = vld [vmem:[#allocation3 + $0x128] sm:$0xf]
          %v516 = vld [vmem:[#allocation3 + $0x12c] sm:$0xf]
          %v517 = vld [vmem:[#allocation3 + $0x130] sm:$0xf]
          %v518 = vld [vmem:[#allocation3 + $0x134] sm:$0xf]
          %v519 = vld [vmem:[#allocation3 + $0x138] sm:$0xf]
          %v520 = vld [vmem:[#allocation3 + $0x13c] sm:$0xf]
          %v521 = vld [vmem:[#allocation3 + $0x140] sm:$0xf]
          %v522 = vld [vmem:[#allocation3 + $0x144] sm:$0xf]
          %v523 = vld [vmem:[#allocation3 + $0x148] sm:$0xf]
          %v524 = vld [vmem:[#allocation3 + $0x14c] sm:$0xf]
          %v525 = vld [vmem:[#allocation3 + $0x150] sm:$0xf]
          %v526 = vld [vmem:[#allocation3 + $0x154] sm:$0xf]
          %v527 = vld [vmem:[#allocation3 + $0x158] sm:$0xf]
          %v528 = vld [vmem:[#allocation3 + $0x15c] sm:$0xf]
          %v529 = vld [vmem:[#allocation3 + $0x160] sm:$0xf]
          %v530 = vld [vmem:[#allocation3 + $0x164] sm:$0xf]
          %v531 = vld [vmem:[#allocation3 + $0x168] sm:$0xf]
          %v532 = vld [vmem:[#allocation3 + $0x16c] sm:$0xf]
          %v533 = vld [vmem:[#allocation3 + $0x170] sm:$0xf]
          %v534 = vld [vmem:[#allocation3 + $0x174] sm:$0xf]
          %v535 = vld [vmem:[#allocation3 + $0x178] sm:$0xf]
          %v536 = vld [vmem:[#allocation3 + $0x17c] sm:$0xf]
          %v537 = vld [vmem:[#allocation3 + $0x180] sm:$0xf]
          %v538 = vld [vmem:[#allocation3 + $0x184] sm:$0xf]
          %v539 = vld [vmem:[#allocation3 + $0x188] sm:$0xf]
          %v540 = vld [vmem:[#allocation3 + $0x18c] sm:$0xf]
          %v541 = vld [vmem:[#allocation3 + $0x190] sm:$0xf]
          %v542 = vld [vmem:[#allocation3 + $0x194] sm:$0xf]
          %v543 = vld [vmem:[#allocation3 + $0x198] sm:$0xf]
          %v544 = vld [vmem:[#allocation3 + $0x19c] sm:$0xf]
          %v545 = vld [vmem:[#allocation3 + $0x1a0] sm:$0xf]
          %v546 = vld [vmem:[#allocation3 + $0x1a4] sm:$0xf]
          %v547 = vld [vmem:[#allocation3 + $0x1a8] sm:$0xf]
          %v548 = vld [vmem:[#allocation3 + $0x1ac] sm:$0xf]
          %v549 = vld [vmem:[#allocation3 + $0x1b0] sm:$0xf]
          %v550 = vld [vmem:[#allocation3 + $0x1b4] sm:$0xf]
          %v551 = vld [vmem:[#allocation3 + $0x1b8] sm:$0xf]
          %v552 = vld [vmem:[#allocation3 + $0x1bc] sm:$0xf]
          %v553 = vld [vmem:[#allocation3 + $0x1c0] sm:$0xf]
          %v554 = vld [vmem:[#allocation3 + $0x1c4] sm:$0xf]
          %v555 = vld [vmem:[#allocation3 + $0x1c8] sm:$0xf]
          %v556 = vld [vmem:[#allocation3 + $0x1cc] sm:$0xf]
          %v557 = vld [vmem:[#allocation3 + $0x1d0] sm:$0xf]
          %v558 = vld [vmem:[#allocation3 + $0x1d4] sm:$0xf]
          %v559 = vld [vmem:[#allocation3 + $0x1d8] sm:$0xf]
          %v560 = vld [vmem:[#allocation3 + $0x1dc] sm:$0xf]
          %v561 = vld [vmem:[#allocation3 + $0x1e0] sm:$0xf]
          %v562 = vld [vmem:[#allocation3 + $0x1e4] sm:$0xf]
          %v563 = vld [vmem:[#allocation3 + $0x1e8] sm:$0xf]
          %v564 = vld [vmem:[#allocation3 + $0x1ec] sm:$0xf]
          %v565 = vld [vmem:[#allocation3 + $0x1f0] sm:$0xf]
          %v566 = vld [vmem:[#allocation3 + $0x1f4] sm:$0xf]
          %v567 = vld [vmem:[#allocation3 + $0x1f8] sm:$0xf]
          %v568 = vld [vmem:[#allocation3 + $0x1fc] sm:$0xf]
          %v569 = vld [vmem:[%s3] sm:$0xf]
          %v570 = vld [vmem:[%s3 + $0x4] sm:$0xf]
          %v571 = vld [vmem:[%s3 + $0x8] sm:$0xf]
          %v572 = vld [vmem:[%s3 + $0xc] sm:$0xf]
          %v573 = vld [vmem:[%s3 + $0x10] sm:$0xf]
          %v574 = vld [vmem:[%s3 + $0x14] sm:$0xf]
          %v575 = vld [vmem:[%s3 + $0x18] sm:$0xf]
          %v576 = vld [vmem:[%s3 + $0x1c] sm:$0xf]
          %v577 = vld [vmem:[%s3 + $0x20] sm:$0xf]
          %v578 = vld [vmem:[%s3 + $0x24] sm:$0xf]
          %v579 = vld [vmem:[%s3 + $0x28] sm:$0xf]
          %v580 = vld [vmem:[%s3 + $0x2c] sm:$0xf]
          %v581 = vld [vmem:[%s3 + $0x30] sm:$0xf]
          %v582 = vld [vmem:[%s3 + $0x34] sm:$0xf]
          %v583 = vld [vmem:[%s3 + $0x38] sm:$0xf]
          %v584 = vld [vmem:[%s3 + $0x3c] sm:$0xf]
          %v585 = vld [vmem:[%s3 + $0x40] sm:$0xf]
          %v586 = vld [vmem:[%s3 + $0x44] sm:$0xf]
          %v587 = vld [vmem:[%s3 + $0x48] sm:$0xf]
          %v588 = vld [vmem:[%s3 + $0x4c] sm:$0xf]
          %v589 = vld [vmem:[%s3 + $0x50] sm:$0xf]
          %v590 = vld [vmem:[%s3 + $0x54] sm:$0xf]
          %v591 = vld [vmem:[%s3 + $0x58] sm:$0xf]
          %v592 = vld [vmem:[%s3 + $0x5c] sm:$0xf]
          %v593 = vld [vmem:[%s3 + $0x60] sm:$0xf]
          %v594 = vld [vmem:[%s3 + $0x64] sm:$0xf]
          %v595 = vld [vmem:[%s3 + $0x68] sm:$0xf]
          %v596 = vld [vmem:[%s3 + $0x6c] sm:$0xf]
          %v597 = vld [vmem:[%s3 + $0x70] sm:$0xf]
          %v598 = vld [vmem:[%s3 + $0x74] sm:$0xf]
          %v599 = vld [vmem:[%s3 + $0x78] sm:$0xf]
          %v600 = vld [vmem:[%s3 + $0x7c] sm:$0xf]
          %v601 = vld [vmem:[%s3 + $0x80] sm:$0xf]
          %v602 = vld [vmem:[%s3 + $0x84] sm:$0xf]
          %v603 = vld [vmem:[%s3 + $0x88] sm:$0xf]
          %v604 = vld [vmem:[%s3 + $0x8c] sm:$0xf]
          %v605 = vld [vmem:[%s3 + $0x90] sm:$0xf]
          %v606 = vld [vmem:[%s3 + $0x94] sm:$0xf]
          %v607 = vld [vmem:[%s3 + $0x98] sm:$0xf]
          %v608 = vld [vmem:[%s3 + $0x9c] sm:$0xf]
          %v609 = vld [vmem:[%s3 + $0xa0] sm:$0xf]
          %v610 = vld [vmem:[%s3 + $0xa4] sm:$0xf]
          %v611 = vld [vmem:[%s3 + $0xa8] sm:$0xf]
          %v612 = vld [vmem:[%s3 + $0xac] sm:$0xf]
          %v613 = vld [vmem:[%s3 + $0xb0] sm:$0xf]
          %v614 = vld [vmem:[%s3 + $0xb4] sm:$0xf]
          %v615 = vld [vmem:[%s3 + $0xb8] sm:$0xf]
          %v616 = vld [vmem:[%s3 + $0xbc] sm:$0xf]
          %v617 = vld [vmem:[%s3 + $0xc0] sm:$0xf]
          %v618 = vld [vmem:[%s3 + $0xc4] sm:$0xf]
          %v619 = vld [vmem:[%s3 + $0xc8] sm:$0xf]
          %v620 = vld [vmem:[%s3 + $0xcc] sm:$0xf]
          %v621 = vld [vmem:[%s3 + $0xd0] sm:$0xf]
          %v622 = vld [vmem:[%s3 + $0xd4] sm:$0xf]
          %v623 = vld [vmem:[%s3 + $0xd8] sm:$0xf]
          %v624 = vld [vmem:[%s3 + $0xdc] sm:$0xf]
          %v625 = vld [vmem:[%s3 + $0xe0] sm:$0xf]
          %v626 = vld [vmem:[%s3 + $0xe4] sm:$0xf]
          %v627 = vld [vmem:[%s3 + $0xe8] sm:$0xf]
          %v628 = vld [vmem:[%s3 + $0xec] sm:$0xf]
          %v629 = vld [vmem:[%s3 + $0xf0] sm:$0xf]
          %v630 = vld [vmem:[%s3 + $0xf4] sm:$0xf]
          %v631 = vld [vmem:[%s3 + $0xf8] sm:$0xf]
          %v632 = vld [vmem:[%s3 + $0xfc] sm:$0xf]
          %v633 = vld [vmem:[%s3 + $0x100] sm:$0xf]
          %v634 = vld [vmem:[%s3 + $0x104] sm:$0xf]
          %v635 = vld [vmem:[%s3 + $0x108] sm:$0xf]
          %v636 = vld [vmem:[%s3 + $0x10c] sm:$0xf]
          %v637 = vld [vmem:[%s3 + $0x110] sm:$0xf]
          %v638 = vld [vmem:[%s3 + $0x114] sm:$0xf]
          %v639 = vld [vmem:[%s3 + $0x118] sm:$0xf]
          %v640 = vld [vmem:[%s3 + $0x11c] sm:$0xf]
          %v641 = vld [vmem:[%s3 + $0x120] sm:$0xf]
          %v642 = vld [vmem:[%s3 + $0x124] sm:$0xf]
          %v643 = vld [vmem:[%s3 + $0x128] sm:$0xf]
          %v644 = vld [vmem:[%s3 + $0x12c] sm:$0xf]
          %v645 = vld [vmem:[%s3 + $0x130] sm:$0xf]
          %v646 = vld [vmem:[%s3 + $0x134] sm:$0xf]
          %v647 = vld [vmem:[%s3 + $0x138] sm:$0xf]
          %v648 = vld [vmem:[%s3 + $0x13c] sm:$0xf]
          %v649 = vld [vmem:[%s3 + $0x140] sm:$0xf]
          %v650 = vld [vmem:[%s3 + $0x144] sm:$0xf]
          %v651 = vld [vmem:[%s3 + $0x148] sm:$0xf]
          %v652 = vld [vmem:[%s3 + $0x14c] sm:$0xf]
          %v653 = vld [vmem:[%s3 + $0x150] sm:$0xf]
          %v654 = vld [vmem:[%s3 + $0x154] sm:$0xf]
          %v655 = vld [vmem:[%s3 + $0x158] sm:$0xf]
          %v656 = vld [vmem:[%s3 + $0x15c] sm:$0xf]
          %v657 = vld [vmem:[%s3 + $0x160] sm:$0xf]
          %v658 = vld [vmem:[%s3 + $0x164] sm:$0xf]
          %v659 = vld [vmem:[%s3 + $0x168] sm:$0xf]
          %v660 = vld [vmem:[%s3 + $0x16c] sm:$0xf]
          %v661 = vld [vmem:[%s3 + $0x170] sm:$0xf]
          %v662 = vld [vmem:[%s3 + $0x174] sm:$0xf]
          %v663 = vld [vmem:[%s3 + $0x178] sm:$0xf]
          %v664 = vld [vmem:[%s3 + $0x17c] sm:$0xf]
          %v665 = vld [vmem:[%s3 + $0x180] sm:$0xf]
          %v666 = vld [vmem:[%s3 + $0x184] sm:$0xf]
          %v667 = vld [vmem:[%s3 + $0x188] sm:$0xf]
          %v668 = vld [vmem:[%s3 + $0x18c] sm:$0xf]
          %v669 = vld [vmem:[%s3 + $0x190] sm:$0xf]
          %v670 = vld [vmem:[%s3 + $0x194] sm:$0xf]
          %v671 = vld [vmem:[%s3 + $0x198] sm:$0xf]
          %v672 = vld [vmem:[%s3 + $0x19c] sm:$0xf]
          %v673 = vld [vmem:[%s3 + $0x1a0] sm:$0xf]
          %v674 = vld [vmem:[%s3 + $0x1a4] sm:$0xf]
          %v675 = vld [vmem:[%s3 + $0x1a8] sm:$0xf]
          %v676 = vld [vmem:[%s3 + $0x1ac] sm:$0xf]
          %v677 = vld [vmem:[%s3 + $0x1b0] sm:$0xf]
          %v678 = vld [vmem:[%s3 + $0x1b4] sm:$0xf]
          %v679 = vld [vmem:[%s3 + $0x1b8] sm:$0xf]
          %v680 = vld [vmem:[%s3 + $0x1bc] sm:$0xf]
          %v681 = vld [vmem:[%s3 + $0x1c0] sm:$0xf]
          %v682 = vld [vmem:[%s3 + $0x1c4] sm:$0xf]
          %v683 = vld [vmem:[%s3 + $0x1c8] sm:$0xf]
          %v684 = vld [vmem:[%s3 + $0x1cc] sm:$0xf]
          %v685 = vld [vmem:[%s3 + $0x1d0] sm:$0xf]
          %v686 = vld [vmem:[%s3 + $0x1d4] sm:$0xf]
          %v687 = vld [vmem:[%s3 + $0x1d8] sm:$0xf]
          %v688 = vld [vmem:[%s3 + $0x1dc] sm:$0xf]
          %v689 = vld [vmem:[%s3 + $0x1e0] sm:$0xf]
          %v690 = vld [vmem:[%s3 + $0x1e4] sm:$0xf]
          %v691 = vld [vmem:[%s3 + $0x1e8] sm:$0xf]
          %v692 = vld [vmem:[%s3 + $0x1ec] sm:$0xf]
          %v693 = vld [vmem:[%s3 + $0x1f0] sm:$0xf]
          %v694 = vld [vmem:[%s3 + $0x1f4] sm:$0xf]
          %v695 = vld [vmem:[%s3 + $0x1f8] sm:$0xf]
          %v696 = vld [vmem:[%s3 + $0x1fc] sm:$0xf]
          %v701 = vunpack.c.l.b16 %v416
          %v702 = vunpack.c.h.b16 %v416
          %v703 = vunpack.c.l.b16 %v417
          %v704 = vunpack.c.h.b16 %v417
          %v705 = vunpack.c.l.b16 %v418
          %v706 = vunpack.c.h.b16 %v418
          %v707 = vunpack.c.l.b16 %v419
          %v708 = vunpack.c.h.b16 %v419
          %v709 = vpack.c.b16 %v701, %v701
          %v710 = vpack.c.b16 %v702, %v702
          %v711 = vpack.c.b16 %v703, %v703
          %v712 = vpack.c.b16 %v704, %v704
          %v713 = vpack.c.b16 %v705, %v705
          %v714 = vpack.c.b16 %v706, %v706
          %v715 = vpack.c.b16 %v707, %v707
          %v716 = vpack.c.b16 %v708, %v708
          %v853 = vunpack.c.l.b16 %v569
          %v854 = vunpack.c.l.b16 %v570
          %v855 = vunpack.c.l.b16 %v571
          %v856 = vunpack.c.l.b16 %v572
          %v857 = vunpack.c.l.b16 %v573
          %v858 = vunpack.c.l.b16 %v574
          %v859 = vunpack.c.l.b16 %v575
          %v860 = vunpack.c.l.b16 %v576
          %v861 = vunpack.c.l.b16 %v577
          %v862 = vunpack.c.l.b16 %v578
          %v863 = vunpack.c.l.b16 %v579
          %v864 = vunpack.c.l.b16 %v580
          %v865 = vunpack.c.l.b16 %v581
          %v866 = vunpack.c.l.b16 %v582
          %v867 = vunpack.c.l.b16 %v583
          %v868 = vunpack.c.l.b16 %v584
          %v869 = vunpack.c.l.b16 %v585
          %v870 = vunpack.c.l.b16 %v586
          %v871 = vunpack.c.l.b16 %v587
          %v872 = vunpack.c.l.b16 %v588
          %v873 = vunpack.c.l.b16 %v589
          %v874 = vunpack.c.l.b16 %v590
          %v875 = vunpack.c.l.b16 %v591
          %v876 = vunpack.c.l.b16 %v592
          %v877 = vunpack.c.l.b16 %v593
          %v878 = vunpack.c.l.b16 %v594
          %v879 = vunpack.c.l.b16 %v595
          %v880 = vunpack.c.l.b16 %v596
          %v881 = vunpack.c.l.b16 %v597
          %v882 = vunpack.c.l.b16 %v598
          %v883 = vunpack.c.l.b16 %v599
          %v884 = vunpack.c.l.b16 %v600
          %v885 = vunpack.c.l.b16 %v601
          %v886 = vunpack.c.l.b16 %v602
          %v887 = vunpack.c.l.b16 %v603
          %v888 = vunpack.c.l.b16 %v604
          %v889 = vunpack.c.l.b16 %v605
          %v890 = vunpack.c.l.b16 %v606
          %v891 = vunpack.c.l.b16 %v607
          %v892 = vunpack.c.l.b16 %v608
          %v893 = vunpack.c.l.b16 %v609
          %v894 = vunpack.c.l.b16 %v610
          %v895 = vunpack.c.l.b16 %v611
          %v896 = vunpack.c.l.b16 %v612
          %v897 = vunpack.c.l.b16 %v613
          %v898 = vunpack.c.l.b16 %v614
          %v899 = vunpack.c.l.b16 %v615
          %v900 = vunpack.c.l.b16 %v616
          %v901 = vunpack.c.l.b16 %v617
          %v902 = vunpack.c.l.b16 %v618
          %v903 = vunpack.c.l.b16 %v619
          %v904 = vunpack.c.l.b16 %v620
          %v905 = vunpack.c.l.b16 %v621
          %v906 = vunpack.c.l.b16 %v622
          %v907 = vunpack.c.l.b16 %v623
          %v908 = vunpack.c.l.b16 %v624
          %v909 = vunpack.c.l.b16 %v625
          %v910 = vunpack.c.l.b16 %v626
          %v911 = vunpack.c.l.b16 %v627
          %v912 = vunpack.c.l.b16 %v628
          %v913 = vunpack.c.l.b16 %v629
          %v914 = vunpack.c.l.b16 %v630
          %v915 = vunpack.c.l.b16 %v631
          %v916 = vunpack.c.l.b16 %v632
          %v917 = vunpack.c.l.b16 %v633
          %v918 = vunpack.c.l.b16 %v634
          %v919 = vunpack.c.l.b16 %v635
          %v920 = vunpack.c.l.b16 %v636
          %v921 = vunpack.c.l.b16 %v637
          %v922 = vunpack.c.l.b16 %v638
          %v923 = vunpack.c.l.b16 %v639
          %v924 = vunpack.c.l.b16 %v640
          %v925 = vunpack.c.l.b16 %v641
          %v926 = vunpack.c.l.b16 %v642
          %v927 = vunpack.c.l.b16 %v643
          %v928 = vunpack.c.l.b16 %v644
          %v929 = vunpack.c.l.b16 %v645
          %v930 = vunpack.c.l.b16 %v646
          %v931 = vunpack.c.l.b16 %v647
          %v932 = vunpack.c.l.b16 %v648
          %v933 = vunpack.c.l.b16 %v649
          %v934 = vunpack.c.l.b16 %v650
          %v935 = vunpack.c.l.b16 %v651
          %v936 = vunpack.c.l.b16 %v652
          %v937 = vunpack.c.l.b16 %v653
          %v938 = vunpack.c.l.b16 %v654
          %v939 = vunpack.c.l.b16 %v655
          %v940 = vunpack.c.l.b16 %v656
          %v941 = vunpack.c.l.b16 %v657
          %v942 = vunpack.c.l.b16 %v658
          %v943 = vunpack.c.l.b16 %v659
          %v944 = vunpack.c.l.b16 %v660
          %v945 = vunpack.c.l.b16 %v661
          %v946 = vunpack.c.l.b16 %v662
          %v947 = vunpack.c.l.b16 %v663
          %v948 = vunpack.c.l.b16 %v664
          %v949 = vunpack.c.l.b16 %v665
          %v950 = vunpack.c.l.b16 %v666
          %v951 = vunpack.c.l.b16 %v667
          %v952 = vunpack.c.l.b16 %v668
          %v953 = vunpack.c.l.b16 %v669
          %v954 = vunpack.c.l.b16 %v670
          %v955 = vunpack.c.l.b16 %v671
          %v956 = vunpack.c.l.b16 %v672
          %v957 = vunpack.c.l.b16 %v673
          %v958 = vunpack.c.l.b16 %v674
          %v959 = vunpack.c.l.b16 %v675
          %v960 = vunpack.c.l.b16 %v676
          %v961 = vunpack.c.l.b16 %v677
          %v962 = vunpack.c.l.b16 %v678
          %v963 = vunpack.c.l.b16 %v679
          %v964 = vunpack.c.l.b16 %v680
          %v965 = vunpack.c.l.b16 %v681
          %v966 = vunpack.c.l.b16 %v682
          %v967 = vunpack.c.l.b16 %v683
          %v968 = vunpack.c.l.b16 %v684
          %v969 = vunpack.c.l.b16 %v685
          %v970 = vunpack.c.l.b16 %v686
          %v971 = vunpack.c.l.b16 %v687
          %v972 = vunpack.c.l.b16 %v688
          %v973 = vunpack.c.l.b16 %v689
          %v974 = vunpack.c.l.b16 %v690
          %v975 = vunpack.c.l.b16 %v691
          %v976 = vunpack.c.l.b16 %v692
          %v977 = vunpack.c.l.b16 %v693
          %v978 = vunpack.c.l.b16 %v694
          %v979 = vunpack.c.l.b16 %v695
          %v980 = vunpack.c.l.b16 %v696
          %v981 = vpack.c.b16 %v854, %v853
          %v982 = vpack.c.b16 %v856, %v855
          %v983 = vpack.c.b16 %v858, %v857
          %v984 = vpack.c.b16 %v860, %v859
          %v985 = vpack.c.b16 %v862, %v861
          %v986 = vpack.c.b16 %v864, %v863
          %v987 = vpack.c.b16 %v866, %v865
          %v988 = vpack.c.b16 %v868, %v867
          %v989 = vpack.c.b16 %v870, %v869
          %v990 = vpack.c.b16 %v872, %v871
          %v991 = vpack.c.b16 %v874, %v873
          %v992 = vpack.c.b16 %v876, %v875
          %v993 = vpack.c.b16 %v878, %v877
          %v994 = vpack.c.b16 %v880, %v879
          %v995 = vpack.c.b16 %v882, %v881
          %v996 = vpack.c.b16 %v884, %v883
          %v997 = vpack.c.b16 %v886, %v885
          %v998 = vpack.c.b16 %v888, %v887
          %v999 = vpack.c.b16 %v890, %v889
          %v1000 = vpack.c.b16 %v892, %v891
          %v1001 = vpack.c.b16 %v894, %v893
          %v1002 = vpack.c.b16 %v896, %v895
          %v1003 = vpack.c.b16 %v898, %v897
          %v1004 = vpack.c.b16 %v900, %v899
          %v1005 = vpack.c.b16 %v902, %v901
          %v1006 = vpack.c.b16 %v904, %v903
          %v1007 = vpack.c.b16 %v906, %v905
          %v1008 = vpack.c.b16 %v908, %v907
          %v1009 = vpack.c.b16 %v910, %v909
          %v1010 = vpack.c.b16 %v912, %v911
          %v1011 = vpack.c.b16 %v914, %v913
          %v1012 = vpack.c.b16 %v916, %v915
          %v1013 = vpack.c.b16 %v918, %v917
          %v1014 = vpack.c.b16 %v920, %v919
          %v1015 = vpack.c.b16 %v922, %v921
          %v1016 = vpack.c.b16 %v924, %v923
          %v1017 = vpack.c.b16 %v926, %v925
          %v1018 = vpack.c.b16 %v928, %v927
          %v1019 = vpack.c.b16 %v930, %v929
          %v1020 = vpack.c.b16 %v932, %v931
          %v1021 = vpack.c.b16 %v934, %v933
          %v1022 = vpack.c.b16 %v936, %v935
          %v1023 = vpack.c.b16 %v938, %v937
          %v1024 = vpack.c.b16 %v940, %v939
          %v1025 = vpack.c.b16 %v942, %v941
          %v1026 = vpack.c.b16 %v944, %v943
          %v1027 = vpack.c.b16 %v946, %v945
          %v1028 = vpack.c.b16 %v948, %v947
          %v1029 = vpack.c.b16 %v950, %v949
          %v1030 = vpack.c.b16 %v952, %v951
          %v1031 = vpack.c.b16 %v954, %v953
          %v1032 = vpack.c.b16 %v956, %v955
          %v1033 = vpack.c.b16 %v958, %v957
          %v1034 = vpack.c.b16 %v960, %v959
          %v1035 = vpack.c.b16 %v962, %v961
          %v1036 = vpack.c.b16 %v964, %v963
          %v1037 = vpack.c.b16 %v966, %v965
          %v1038 = vpack.c.b16 %v968, %v967
          %v1039 = vpack.c.b16 %v970, %v969
          %v1040 = vpack.c.b16 %v972, %v971
          %v1041 = vpack.c.b16 %v974, %v973
          %v1042 = vpack.c.b16 %v976, %v975
          %v1043 = vpack.c.b16 %v978, %v977
          %v1044 = vpack.c.b16 %v980, %v979
          %1109 = vmatprep.subr.bf16.mxu0 0
          %1110 = vmatpush1.bf16.msra.mxu0 %v988
          %1111 = vmatprep.subr.bf16.mxu0 0
          %1112 = vmatpush1.bf16.msra.mxu0 %v987
          %1113 = vmatprep.subr.bf16.mxu0 0
          %1114 = vmatpush1.bf16.msra.mxu0 %v986
          %1115 = vmatprep.subr.bf16.mxu0 0
          %1116 = vmatpush1.bf16.msra.mxu0 %v985
          %1117 = vmatprep.subr.bf16.mxu0 0
          %1118 = vmatpush1.bf16.msra.mxu0 %v984
          %1119 = vmatprep.subr.bf16.mxu0 0
          %1120 = vmatpush1.bf16.msra.mxu0 %v983
          %1121 = vmatprep.subr.bf16.mxu0 0
          %1122 = vmatpush1.bf16.msra.mxu0 %v982
          %1123 = vmatprep.subr.bf16.mxu0 0
          %1124 = vmatpush1.bf16.msra.mxu0 %v981
          %1125 = vmatprep.subr.bf16.mxu0 0
          %1126 = vmatpush2.bf16.msra.mxu0 %v996
          %1127 = vmatprep.subr.bf16.mxu0 0
          %1128 = vmatpush2.bf16.msra.mxu0 %v995
          %1129 = vmatprep.subr.bf16.mxu0 0
          %1130 = vmatpush2.bf16.msra.mxu0 %v994
          %1131 = vmatprep.subr.bf16.mxu0 0
          %1132 = vmatpush2.bf16.msra.mxu0 %v993
          %1133 = vmatprep.subr.bf16.mxu0 0
          %1134 = vmatpush2.bf16.msra.mxu0 %v992
          %1135 = vmatprep.subr.bf16.mxu0 0
          %1136 = vmatpush2.bf16.msra.mxu0 %v991
          %1137 = vmatprep.subr.bf16.mxu0 0
          %1138 = vmatpush2.bf16.msra.mxu0 %v990
          %1139 = vmatprep.subr.bf16.mxu0 0
          %1140 = vmatpush2.bf16.msra.mxu0 %v989
          %1141 = vmatprep.mubr.bf16.mxu0 %v710
          %1142 = vmatmul.mubr.bf16.gmra.mxu0 %v709
          %v1143 = vpop.f32.mrf.mxu0
          %v1144 = vadd.f32 0.0, %v1143
          %v1145 = vpop.f32.mrf.mxu0
          %v1146 = vpop.f32.mrf.mxu0
          %v1147 = vpop.f32.mrf.mxu0
          %1148 = vdwg.mxu0
          %1149 = vmatprep.subr.bf16.mxu0 0
          %1150 = vmatpush1.bf16.msra.mxu0 %v1004
          %1151 = vmatprep.subr.bf16.mxu0 0
          %1152 = vmatpush1.bf16.msra.mxu0 %v1003
          %1153 = vmatprep.subr.bf16.mxu0 0
          %1154 = vmatpush1.bf16.msra.mxu0 %v1002
          %1155 = vmatprep.subr.bf16.mxu0 0
          %1156 = vmatpush1.bf16.msra.mxu0 %v1001
          %1157 = vmatprep.subr.bf16.mxu0 0
          %1158 = vmatpush1.bf16.msra.mxu0 %v1000
          %1159 = vmatprep.subr.bf16.mxu0 0
          %1160 = vmatpush1.bf16.msra.mxu0 %v999
          %1161 = vmatprep.subr.bf16.mxu0 0
          %1162 = vmatpush1.bf16.msra.mxu0 %v998
          %1163 = vmatprep.subr.bf16.mxu0 0
          %1164 = vmatpush1.bf16.msra.mxu0 %v997
          %1165 = vmatprep.subr.bf16.mxu0 0
          %1166 = vmatpush2.bf16.msra.mxu0 %v1012
          %1167 = vmatprep.subr.bf16.mxu0 0
          %1168 = vmatpush2.bf16.msra.mxu0 %v1011
          %1169 = vmatprep.subr.bf16.mxu0 0
          %1170 = vmatpush2.bf16.msra.mxu0 %v1010
          %1171 = vmatprep.subr.bf16.mxu0 0
          %1172 = vmatpush2.bf16.msra.mxu0 %v1009
          %1173 = vmatprep.subr.bf16.mxu0 0
          %1174 = vmatpush2.bf16.msra.mxu0 %v1008
          %1175 = vmatprep.subr.bf16.mxu0 0
          %1176 = vmatpush2.bf16.msra.mxu0 %v1007
          %1177 = vmatprep.subr.bf16.mxu0 0
          %1178 = vmatpush2.bf16.msra.mxu0 %v1006
          %1179 = vmatprep.subr.bf16.mxu0 0
          %1180 = vmatpush2.bf16.msra.mxu0 %v1005
          %1181 = vmatprep.mubr.bf16.mxu0 %v712
          %1182 = vmatmul.mubr.bf16.gmra.mxu0 %v711
          %v1183 = vpop.f32.mrf.mxu0
          %v1184 = vadd.f32 %v1144, %v1183
          %v1185 = vpop.f32.mrf.mxu0
          %v1186 = vpop.f32.mrf.mxu0
          %v1187 = vpop.f32.mrf.mxu0
          %1188 = vdwg.mxu0
          %1189 = vmatprep.subr.bf16.mxu0 0
          %1190 = vmatpush1.bf16.msra.mxu0 %v1020
          %1191 = vmatprep.subr.bf16.mxu0 0
          %1192 = vmatpush1.bf16.msra.mxu0 %v1019
          %1193 = vmatprep.subr.bf16.mxu0 0
          %1194 = vmatpush1.bf16.msra.mxu0 %v1018
          %1195 = vmatprep.subr.bf16.mxu0 0
          %1196 = vmatpush1.bf16.msra.mxu0 %v1017
          %1197 = vmatprep.subr.bf16.mxu0 0
          %1198 = vmatpush1.bf16.msra.mxu0 %v1016
          %1199 = vmatprep.subr.bf16.mxu0 0
          %1200 = vmatpush1.bf16.msra.mxu0 %v1015
          %1201 = vmatprep.subr.bf16.mxu0 0
          %1202 = vmatpush1.bf16.msra.mxu0 %v1014
          %1203 = vmatprep.subr.bf16.mxu0 0
          %1204 = vmatpush1.bf16.msra.mxu0 %v1013
          %1205 = vmatprep.subr.bf16.mxu0 0
          %1206 = vmatpush2.bf16.msra.mxu0 %v1028
          %1207 = vmatprep.subr.bf16.mxu0 0
          %1208 = vmatpush2.bf16.msra.mxu0 %v1027
          %1209 = vmatprep.subr.bf16.mxu0 0
          %1210 = vmatpush2.bf16.msra.mxu0 %v1026
          %1211 = vmatprep.subr.bf16.mxu0 0
          %1212 = vmatpush2.bf16.msra.mxu0 %v1025
          %1213 = vmatprep.subr.bf16.mxu0 0
          %1214 = vmatpush2.bf16.msra.mxu0 %v1024
          %1215 = vmatprep.subr.bf16.mxu0 0
          %1216 = vmatpush2.bf16.msra.mxu0 %v1023
          %1217 = vmatprep.subr.bf16.mxu0 0
          %1218 = vmatpush2.bf16.msra.mxu0 %v1022
          %1219 = vmatprep.subr.bf16.mxu0 0
          %1220 = vmatpush2.bf16.msra.mxu0 %v1021
          %1221 = vmatprep.mubr.bf16.mxu0 %v714
          %1222 = vmatmul.mubr.bf16.gmra.mxu0 %v713
          %v1223 = vpop.f32.mrf.mxu0
          %v1224 = vadd.f32 %v1184, %v1223
          %v1225 = vpop.f32.mrf.mxu0
          %v1226 = vpop.f32.mrf.mxu0
          %v1227 = vpop.f32.mrf.mxu0
          %1228 = vdwg.mxu0
          %1229 = vmatprep.subr.bf16.mxu0 0
          %1230 = vmatpush1.bf16.msra.mxu0 %v1036
          %1231 = vmatprep.subr.bf16.mxu0 0
          %1232 = vmatpush1.bf16.msra.mxu0 %v1035
          %1233 = vmatprep.subr.bf16.mxu0 0
          %1234 = vmatpush1.bf16.msra.mxu0 %v1034
          %1235 = vmatprep.subr.bf16.mxu0 0
          %1236 = vmatpush1.bf16.msra.mxu0 %v1033
          %1237 = vmatprep.subr.bf16.mxu0 0
          %1238 = vmatpush1.bf16.msra.mxu0 %v1032
          %1239 = vmatprep.subr.bf16.mxu0 0
          %1240 = vmatpush1.bf16.msra.mxu0 %v1031
          %1241 = vmatprep.subr.bf16.mxu0 0
          %1242 = vmatpush1.bf16.msra.mxu0 %v1030
          %1243 = vmatprep.subr.bf16.mxu0 0
          %1244 = vmatpush1.bf16.msra.mxu0 %v1029
          %1245 = vmatprep.subr.bf16.mxu0 0
          %1246 = vmatpush2.bf16.msra.mxu0 %v1044
          %1247 = vmatprep.subr.bf16.mxu0 0
          %1248 = vmatpush2.bf16.msra.mxu0 %v1043
          %1249 = vmatprep.subr.bf16.mxu0 0
          %1250 = vmatpush2.bf16.msra.mxu0 %v1042
          %1251 = vmatprep.subr.bf16.mxu0 0
          %1252 = vmatpush2.bf16.msra.mxu0 %v1041
          %1253 = vmatprep.subr.bf16.mxu0 0
          %1254 = vmatpush2.bf16.msra.mxu0 %v1040
          %1255 = vmatprep.subr.bf16.mxu0 0
          %1256 = vmatpush2.bf16.msra.mxu0 %v1039
          %1257 = vmatprep.subr.bf16.mxu0 0
          %1258 = vmatpush2.bf16.msra.mxu0 %v1038
          %1259 = vmatprep.subr.bf16.mxu0 0
          %1260 = vmatpush2.bf16.msra.mxu0 %v1037
          %1261 = vmatprep.mubr.bf16.mxu0 %v716
          %1262 = vmatmul.mubr.bf16.gmra.mxu0 %v715
          %v1263 = vpop.f32.mrf.mxu0
          %v1264 = vadd.f32 %v1224, %v1263
          %v1265 = vpop.f32.mrf.mxu0
          %v1266 = vpop.f32.mrf.mxu0
          %v1267 = vpop.f32.mrf.mxu0
          %1268 = vdwg.mxu0
          %v1273 = vunpack.c.l.b16 %v420
          %v1274 = vunpack.c.h.b16 %v420
          %v1275 = vunpack.c.l.b16 %v421
          %v1276 = vunpack.c.h.b16 %v421
          %v1277 = vunpack.c.l.b16 %v422
          %v1278 = vunpack.c.h.b16 %v422
          %v1279 = vunpack.c.l.b16 %v423
          %v1280 = vunpack.c.h.b16 %v423
          %v1281 = vpack.c.b16 %v1273, %v1273
          %v1282 = vpack.c.b16 %v1274, %v1274
          %v1283 = vpack.c.b16 %v1275, %v1275
          %v1284 = vpack.c.b16 %v1276, %v1276
          %v1285 = vpack.c.b16 %v1277, %v1277
          %v1286 = vpack.c.b16 %v1278, %v1278
          %v1287 = vpack.c.b16 %v1279, %v1279
          %v1288 = vpack.c.b16 %v1280, %v1280
          %v1425 = vunpack.c.l.b16 %v441
          %v1426 = vunpack.c.l.b16 %v442
          %v1427 = vunpack.c.l.b16 %v443
          %v1428 = vunpack.c.l.b16 %v444
          %v1429 = vunpack.c.l.b16 %v445
          %v1430 = vunpack.c.l.b16 %v446
          %v1431 = vunpack.c.l.b16 %v447
          %v1432 = vunpack.c.l.b16 %v448
          %v1433 = vunpack.c.l.b16 %v449
          %v1434 = vunpack.c.l.b16 %v450
          %v1435 = vunpack.c.l.b16 %v451
          %v1436 = vunpack.c.l.b16 %v452
          %v1437 = vunpack.c.l.b16 %v453
          %v1438 = vunpack.c.l.b16 %v454
          %v1439 = vunpack.c.l.b16 %v455
          %v1440 = vunpack.c.l.b16 %v456
          %v1441 = vunpack.c.l.b16 %v457
          %v1442 = vunpack.c.l.b16 %v458
          %v1443 = vunpack.c.l.b16 %v459
          %v1444 = vunpack.c.l.b16 %v460
          %v1445 = vunpack.c.l.b16 %v461
          %v1446 = vunpack.c.l.b16 %v462
          %v1447 = vunpack.c.l.b16 %v463
          %v1448 = vunpack.c.l.b16 %v464
          %v1449 = vunpack.c.l.b16 %v465
          %v1450 = vunpack.c.l.b16 %v466
          %v1451 = vunpack.c.l.b16 %v467
          %v1452 = vunpack.c.l.b16 %v468
          %v1453 = vunpack.c.l.b16 %v469
          %v1454 = vunpack.c.l.b16 %v470
          %v1455 = vunpack.c.l.b16 %v471
          %v1456 = vunpack.c.l.b16 %v472
          %v1457 = vunpack.c.l.b16 %v473
          %v1458 = vunpack.c.l.b16 %v474
          %v1459 = vunpack.c.l.b16 %v475
          %v1460 = vunpack.c.l.b16 %v476
          %v1461 = vunpack.c.l.b16 %v477
          %v1462 = vunpack.c.l.b16 %v478
          %v1463 = vunpack.c.l.b16 %v479
          %v1464 = vunpack.c.l.b16 %v480
          %v1465 = vunpack.c.l.b16 %v481
          %v1466 = vunpack.c.l.b16 %v482
          %v1467 = vunpack.c.l.b16 %v483
          %v1468 = vunpack.c.l.b16 %v484
          %v1469 = vunpack.c.l.b16 %v485
          %v1470 = vunpack.c.l.b16 %v486
          %v1471 = vunpack.c.l.b16 %v487
          %v1472 = vunpack.c.l.b16 %v488
          %v1473 = vunpack.c.l.b16 %v489
          %v1474 = vunpack.c.l.b16 %v490
          %v1475 = vunpack.c.l.b16 %v491
          %v1476 = vunpack.c.l.b16 %v492
          %v1477 = vunpack.c.l.b16 %v493
          %v1478 = vunpack.c.l.b16 %v494
          %v1479 = vunpack.c.l.b16 %v495
          %v1480 = vunpack.c.l.b16 %v496
          %v1481 = vunpack.c.l.b16 %v497
          %v1482 = vunpack.c.l.b16 %v498
          %v1483 = vunpack.c.l.b16 %v499
          %v1484 = vunpack.c.l.b16 %v500
          %v1485 = vunpack.c.l.b16 %v501
          %v1486 = vunpack.c.l.b16 %v502
          %v1487 = vunpack.c.l.b16 %v503
          %v1488 = vunpack.c.l.b16 %v504
          %v1489 = vunpack.c.l.b16 %v505
          %v1490 = vunpack.c.l.b16 %v506
          %v1491 = vunpack.c.l.b16 %v507
          %v1492 = vunpack.c.l.b16 %v508
          %v1493 = vunpack.c.l.b16 %v509
          %v1494 = vunpack.c.l.b16 %v510
          %v1495 = vunpack.c.l.b16 %v511
          %v1496 = vunpack.c.l.b16 %v512
          %v1497 = vunpack.c.l.b16 %v513
          %v1498 = vunpack.c.l.b16 %v514
          %v1499 = vunpack.c.l.b16 %v515
          %v1500 = vunpack.c.l.b16 %v516
          %v1501 = vunpack.c.l.b16 %v517
          %v1502 = vunpack.c.l.b16 %v518
          %v1503 = vunpack.c.l.b16 %v519
          %v1504 = vunpack.c.l.b16 %v520
          %v1505 = vunpack.c.l.b16 %v521
          %v1506 = vunpack.c.l.b16 %v522
          %v1507 = vunpack.c.l.b16 %v523
          %v1508 = vunpack.c.l.b16 %v524
          %v1509 = vunpack.c.l.b16 %v525
          %v1510 = vunpack.c.l.b16 %v526
          %v1511 = vunpack.c.l.b16 %v527
          %v1512 = vunpack.c.l.b16 %v528
          %v1513 = vunpack.c.l.b16 %v529
          %v1514 = vunpack.c.l.b16 %v530
          %v1515 = vunpack.c.l.b16 %v531
          %v1516 = vunpack.c.l.b16 %v532
          %v1517 = vunpack.c.l.b16 %v533
          %v1518 = vunpack.c.l.b16 %v534
          %v1519 = vunpack.c.l.b16 %v535
          %v1520 = vunpack.c.l.b16 %v536
          %v1521 = vunpack.c.l.b16 %v537
          %v1522 = vunpack.c.l.b16 %v538
          %v1523 = vunpack.c.l.b16 %v539
          %v1524 = vunpack.c.l.b16 %v540
          %v1525 = vunpack.c.l.b16 %v541
          %v1526 = vunpack.c.l.b16 %v542
          %v1527 = vunpack.c.l.b16 %v543
          %v1528 = vunpack.c.l.b16 %v544
          %v1529 = vunpack.c.l.b16 %v545
          %v1530 = vunpack.c.l.b16 %v546
          %v1531 = vunpack.c.l.b16 %v547
          %v1532 = vunpack.c.l.b16 %v548
          %v1533 = vunpack.c.l.b16 %v549
          %v1534 = vunpack.c.l.b16 %v550
          %v1535 = vunpack.c.l.b16 %v551
          %v1536 = vunpack.c.l.b16 %v552
          %v1537 = vunpack.c.l.b16 %v553
          %v1538 = vunpack.c.l.b16 %v554
          %v1539 = vunpack.c.l.b16 %v555
          %v1540 = vunpack.c.l.b16 %v556
          %v1541 = vunpack.c.l.b16 %v557
          %v1542 = vunpack.c.l.b16 %v558
          %v1543 = vunpack.c.l.b16 %v559
          %v1544 = vunpack.c.l.b16 %v560
          %v1545 = vunpack.c.l.b16 %v561
          %v1546 = vunpack.c.l.b16 %v562
          %v1547 = vunpack.c.l.b16 %v563
          %v1548 = vunpack.c.l.b16 %v564
          %v1549 = vunpack.c.l.b16 %v565
          %v1550 = vunpack.c.l.b16 %v566
          %v1551 = vunpack.c.l.b16 %v567
          %v1552 = vunpack.c.l.b16 %v568
          %v1553 = vpack.c.b16 %v1426, %v1425
          %v1554 = vpack.c.b16 %v1428, %v1427
          %v1555 = vpack.c.b16 %v1430, %v1429
          %v1556 = vpack.c.b16 %v1432, %v1431
          %v1557 = vpack.c.b16 %v1434, %v1433
          %v1558 = vpack.c.b16 %v1436, %v1435
          %v1559 = vpack.c.b16 %v1438, %v1437
          %v1560 = vpack.c.b16 %v1440, %v1439
          %v1561 = vpack.c.b16 %v1442, %v1441
          %v1562 = vpack.c.b16 %v1444, %v1443
          %v1563 = vpack.c.b16 %v1446, %v1445
          %v1564 = vpack.c.b16 %v1448, %v1447
          %v1565 = vpack.c.b16 %v1450, %v1449
          %v1566 = vpack.c.b16 %v1452, %v1451
          %v1567 = vpack.c.b16 %v1454, %v1453
          %v1568 = vpack.c.b16 %v1456, %v1455
          %v1569 = vpack.c.b16 %v1458, %v1457
          %v1570 = vpack.c.b16 %v1460, %v1459
          %v1571 = vpack.c.b16 %v1462, %v1461
          %v1572 = vpack.c.b16 %v1464, %v1463
          %v1573 = vpack.c.b16 %v1466, %v1465
          %v1574 = vpack.c.b16 %v1468, %v1467
          %v1575 = vpack.c.b16 %v1470, %v1469
          %v1576 = vpack.c.b16 %v1472, %v1471
          %v1577 = vpack.c.b16 %v1474, %v1473
          %v1578 = vpack.c.b16 %v1476, %v1475
          %v1579 = vpack.c.b16 %v1478, %v1477
          %v1580 = vpack.c.b16 %v1480, %v1479
          %v1581 = vpack.c.b16 %v1482, %v1481
          %v1582 = vpack.c.b16 %v1484, %v1483
          %v1583 = vpack.c.b16 %v1486, %v1485
          %v1584 = vpack.c.b16 %v1488, %v1487
          %v1585 = vpack.c.b16 %v1490, %v1489
          %v1586 = vpack.c.b16 %v1492, %v1491
          %v1587 = vpack.c.b16 %v1494, %v1493
          %v1588 = vpack.c.b16 %v1496, %v1495
          %v1589 = vpack.c.b16 %v1498, %v1497
          %v1590 = vpack.c.b16 %v1500, %v1499
          %v1591 = vpack.c.b16 %v1502, %v1501
          %v1592 = vpack.c.b16 %v1504, %v1503
          %v1593 = vpack.c.b16 %v1506, %v1505
          %v1594 = vpack.c.b16 %v1508, %v1507
          %v1595 = vpack.c.b16 %v1510, %v1509
          %v1596 = vpack.c.b16 %v1512, %v1511
          %v1597 = vpack.c.b16 %v1514, %v1513
          %v1598 = vpack.c.b16 %v1516, %v1515
          %v1599 = vpack.c.b16 %v1518, %v1517
          %v1600 = vpack.c.b16 %v1520, %v1519
          %v1601 = vpack.c.b16 %v1522, %v1521
          %v1602 = vpack.c.b16 %v1524, %v1523
          %v1603 = vpack.c.b16 %v1526, %v1525
          %v1604 = vpack.c.b16 %v1528, %v1527
          %v1605 = vpack.c.b16 %v1530, %v1529
          %v1606 = vpack.c.b16 %v1532, %v1531
          %v1607 = vpack.c.b16 %v1534, %v1533
          %v1608 = vpack.c.b16 %v1536, %v1535
          %v1609 = vpack.c.b16 %v1538, %v1537
          %v1610 = vpack.c.b16 %v1540, %v1539
          %v1611 = vpack.c.b16 %v1542, %v1541
          %v1612 = vpack.c.b16 %v1544, %v1543
          %v1613 = vpack.c.b16 %v1546, %v1545
          %v1614 = vpack.c.b16 %v1548, %v1547
          %v1615 = vpack.c.b16 %v1550, %v1549
          %v1616 = vpack.c.b16 %v1552, %v1551
          %1681 = vmatprep.subr.bf16.mxu0 0
          %1682 = vmatpush1.bf16.msra.mxu0 %v1560
          %1683 = vmatprep.subr.bf16.mxu0 0
          %1684 = vmatpush1.bf16.msra.mxu0 %v1559
          %1685 = vmatprep.subr.bf16.mxu0 0
          %1686 = vmatpush1.bf16.msra.mxu0 %v1558
          %1687 = vmatprep.subr.bf16.mxu0 0
          %1688 = vmatpush1.bf16.msra.mxu0 %v1557
          %1689 = vmatprep.subr.bf16.mxu0 0
          %1690 = vmatpush1.bf16.msra.mxu0 %v1556
          %1691 = vmatprep.subr.bf16.mxu0 0
          %1692 = vmatpush1.bf16.msra.mxu0 %v1555
          %1693 = vmatprep.subr.bf16.mxu0 0
          %1694 = vmatpush1.bf16.msra.mxu0 %v1554
          %1695 = vmatprep.subr.bf16.mxu0 0
          %1696 = vmatpush1.bf16.msra.mxu0 %v1553
          %1697 = vmatprep.subr.bf16.mxu0 0
          %1698 = vmatpush2.bf16.msra.mxu0 %v1568
          %1699 = vmatprep.subr.bf16.mxu0 0
          %1700 = vmatpush2.bf16.msra.mxu0 %v1567
          %1701 = vmatprep.subr.bf16.mxu0 0
          %1702 = vmatpush2.bf16.msra.mxu0 %v1566
          %1703 = vmatprep.subr.bf16.mxu0 0
          %1704 = vmatpush2.bf16.msra.mxu0 %v1565
          %1705 = vmatprep.subr.bf16.mxu0 0
          %1706 = vmatpush2.bf16.msra.mxu0 %v1564
          %1707 = vmatprep.subr.bf16.mxu0 0
          %1708 = vmatpush2.bf16.msra.mxu0 %v1563
          %1709 = vmatprep.subr.bf16.mxu0 0
          %1710 = vmatpush2.bf16.msra.mxu0 %v1562
          %1711 = vmatprep.subr.bf16.mxu0 0
          %1712 = vmatpush2.bf16.msra.mxu0 %v1561
          %1713 = vmatprep.mubr.bf16.mxu0 %v1282
          %1714 = vmatmul.mubr.bf16.gmra.mxu0 %v1281
          %v1715 = vpop.f32.mrf.mxu0
          %v1716 = vadd.f32 %v1264, %v1715
          %v1717 = vpop.f32.mrf.mxu0
          %v1718 = vpop.f32.mrf.mxu0
          %v1719 = vpop.f32.mrf.mxu0
          %1720 = vdwg.mxu0
          %1721 = vmatprep.subr.bf16.mxu0 0
          %1722 = vmatpush1.bf16.msra.mxu0 %v1576
          %1723 = vmatprep.subr.bf16.mxu0 0
          %1724 = vmatpush1.bf16.msra.mxu0 %v1575
          %1725 = vmatprep.subr.bf16.mxu0 0
          %1726 = vmatpush1.bf16.msra.mxu0 %v1574
          %1727 = vmatprep.subr.bf16.mxu0 0
          %1728 = vmatpush1.bf16.msra.mxu0 %v1573
          %1729 = vmatprep.subr.bf16.mxu0 0
          %1730 = vmatpush1.bf16.msra.mxu0 %v1572
          %1731 = vmatprep.subr.bf16.mxu0 0
          %1732 = vmatpush1.bf16.msra.mxu0 %v1571
          %1733 = vmatprep.subr.bf16.mxu0 0
          %1734 = vmatpush1.bf16.msra.mxu0 %v1570
          %1735 = vmatprep.subr.bf16.mxu0 0
          %1736 = vmatpush1.bf16.msra.mxu0 %v1569
          %1737 = vmatprep.subr.bf16.mxu0 0
          %1738 = vmatpush2.bf16.msra.mxu0 %v1584
          %1739 = vmatprep.subr.bf16.mxu0 0
          %1740 = vmatpush2.bf16.msra.mxu0 %v1583
          %1741 = vmatprep.subr.bf16.mxu0 0
          %1742 = vmatpush2.bf16.msra.mxu0 %v1582
          %1743 = vmatprep.subr.bf16.mxu0 0
          %1744 = vmatpush2.bf16.msra.mxu0 %v1581
          %1745 = vmatprep.subr.bf16.mxu0 0
          %1746 = vmatpush2.bf16.msra.mxu0 %v1580
          %1747 = vmatprep.subr.bf16.mxu0 0
          %1748 = vmatpush2.bf16.msra.mxu0 %v1579
          %1749 = vmatprep.subr.bf16.mxu0 0
          %1750 = vmatpush2.bf16.msra.mxu0 %v1578
          %1751 = vmatprep.subr.bf16.mxu0 0
          %1752 = vmatpush2.bf16.msra.mxu0 %v1577
          %1753 = vmatprep.mubr.bf16.mxu0 %v1284
          %1754 = vmatmul.mubr.bf16.gmra.mxu0 %v1283
          %v1755 = vpop.f32.mrf.mxu0
          %v1756 = vadd.f32 %v1716, %v1755
          %v1757 = vpop.f32.mrf.mxu0
          %v1758 = vpop.f32.mrf.mxu0
          %v1759 = vpop.f32.mrf.mxu0
          %1760 = vdwg.mxu0
          %1761 = vmatprep.subr.bf16.mxu0 0
          %1762 = vmatpush1.bf16.msra.mxu0 %v1592
          %1763 = vmatprep.subr.bf16.mxu0 0
          %1764 = vmatpush1.bf16.msra.mxu0 %v1591
          %1765 = vmatprep.subr.bf16.mxu0 0
          %1766 = vmatpush1.bf16.msra.mxu0 %v1590
          %1767 = vmatprep.subr.bf16.mxu0 0
          %1768 = vmatpush1.bf16.msra.mxu0 %v1589
          %1769 = vmatprep.subr.bf16.mxu0 0
          %1770 = vmatpush1.bf16.msra.mxu0 %v1588
          %1771 = vmatprep.subr.bf16.mxu0 0
          %1772 = vmatpush1.bf16.msra.mxu0 %v1587
          %1773 = vmatprep.subr.bf16.mxu0 0
          %1774 = vmatpush1.bf16.msra.mxu0 %v1586
          %1775 = vmatprep.subr.bf16.mxu0 0
          %1776 = vmatpush1.bf16.msra.mxu0 %v1585
          %1777 = vmatprep.subr.bf16.mxu0 0
          %1778 = vmatpush2.bf16.msra.mxu0 %v1600
          %1779 = vmatprep.subr.bf16.mxu0 0
          %1780 = vmatpush2.bf16.msra.mxu0 %v1599
          %1781 = vmatprep.subr.bf16.mxu0 0
          %1782 = vmatpush2.bf16.msra.mxu0 %v1598
          %1783 = vmatprep.subr.bf16.mxu0 0
          %1784 = vmatpush2.bf16.msra.mxu0 %v1597
          %1785 = vmatprep.subr.bf16.mxu0 0
          %1786 = vmatpush2.bf16.msra.mxu0 %v1596
          %1787 = vmatprep.subr.bf16.mxu0 0
          %1788 = vmatpush2.bf16.msra.mxu0 %v1595
          %1789 = vmatprep.subr.bf16.mxu0 0
          %1790 = vmatpush2.bf16.msra.mxu0 %v1594
          %1791 = vmatprep.subr.bf16.mxu0 0
          %1792 = vmatpush2.bf16.msra.mxu0 %v1593
          %1793 = vmatprep.mubr.bf16.mxu0 %v1286
          %1794 = vmatmul.mubr.bf16.gmra.mxu0 %v1285
          %v1795 = vpop.f32.mrf.mxu0
          %v1796 = vadd.f32 %v1756, %v1795
          %v1797 = vpop.f32.mrf.mxu0
          %v1798 = vpop.f32.mrf.mxu0
          %v1799 = vpop.f32.mrf.mxu0
          %1800 = vdwg.mxu0
          %1801 = vmatprep.subr.bf16.mxu0 0
          %1802 = vmatpush1.bf16.msra.mxu0 %v1608
          %1803 = vmatprep.subr.bf16.mxu0 0
          %1804 = vmatpush1.bf16.msra.mxu0 %v1607
          %1805 = vmatprep.subr.bf16.mxu0 0
          %1806 = vmatpush1.bf16.msra.mxu0 %v1606
          %1807 = vmatprep.subr.bf16.mxu0 0
          %1808 = vmatpush1.bf16.msra.mxu0 %v1605
          %1809 = vmatprep.subr.bf16.mxu0 0
          %1810 = vmatpush1.bf16.msra.mxu0 %v1604
          %1811 = vmatprep.subr.bf16.mxu0 0
          %1812 = vmatpush1.bf16.msra.mxu0 %v1603
          %1813 = vmatprep.subr.bf16.mxu0 0
          %1814 = vmatpush1.bf16.msra.mxu0 %v1602
          %1815 = vmatprep.subr.bf16.mxu0 0
          %1816 = vmatpush1.bf16.msra.mxu0 %v1601
          %1817 = vmatprep.subr.bf16.mxu0 0
          %1818 = vmatpush2.bf16.msra.mxu0 %v1616
          %1819 = vmatprep.subr.bf16.mxu0 0
          %1820 = vmatpush2.bf16.msra.mxu0 %v1615
          %1821 = vmatprep.subr.bf16.mxu0 0
          %1822 = vmatpush2.bf16.msra.mxu0 %v1614
          %1823 = vmatprep.subr.bf16.mxu0 0
          %1824 = vmatpush2.bf16.msra.mxu0 %v1613
          %1825 = vmatprep.subr.bf16.mxu0 0
          %1826 = vmatpush2.bf16.msra.mxu0 %v1612
          %1827 = vmatprep.subr.bf16.mxu0 0
          %1828 = vmatpush2.bf16.msra.mxu0 %v1611
          %1829 = vmatprep.subr.bf16.mxu0 0
          %1830 = vmatpush2.bf16.msra.mxu0 %v1610
          %1831 = vmatprep.subr.bf16.mxu0 0
          %1832 = vmatpush2.bf16.msra.mxu0 %v1609
          %1833 = vmatprep.mubr.bf16.mxu0 %v1288
          %1834 = vmatmul.mubr.bf16.gmra.mxu0 %v1287
          %v1835 = vpop.f32.mrf.mxu0
          %v1836 = vadd.f32 %v1796, %v1835
          %v1837 = vpop.f32.mrf.mxu0
          %v1838 = vpop.f32.mrf.mxu0
          %v1839 = vpop.f32.mrf.mxu0
          %1840 = vdwg.mxu0
          %v1841 = vld [vmem:[%s4] sm:$0x1]
          %v1843 = vlaneseq
          %v1844 = vshrl.u32 %v1843, 7
          %v1845 = vsub.s32 0, %v1844
          %v1846 = vrot.slane %v1841, %v1845
          %v1848 = vadd.f32 %v1836, %v1846
          %v1849 = vld [vmem:[%s5] sm:$0x1]
          %v1851 = vlaneseq
          %v1852 = vshrl.u32 %v1851, 7
          %v1853 = vsub.s32 0, %v1852
          %v1854 = vrot.slane %v1849, %v1853
          %v1856 = vmul.f32 %v440, %v1854
          %v1857 = vadd.f32 %v1848, %v1856
          %v1858 = vmax.f32 %v1857, 0.0
          %v1859 = vpack.c.bf16 %v1858, %v1858
          %1860 = vst [vmem:[#allocation2] sm:$0xf] %v1859
        $region64: #{_forward_impl.1} parent=51 // pred_fallthru
          _
        %v1861 = vld [vmem:[#allocation2] sm:$0xf]
        %v1862 = vld [vmem:[#allocation5] sm:$0xff]
        %v1863 = vld [vmem:[#allocation5 + $0x8] sm:$0xff]
        %v1864 = vld [vmem:[#allocation5 + $0x10] sm:$0xff]
        %v1865 = vld [vmem:[#allocation5 + $0x18] sm:$0xff]
        %v1866 = vld [vmem:[#allocation5 + $0x20] sm:$0xff]
        %v1867 = vld [vmem:[#allocation5 + $0x28] sm:$0xff]
        %v1868 = vld [vmem:[#allocation5 + $0x30] sm:$0xff]
        %v1869 = vld [vmem:[#allocation5 + $0x38] sm:$0xff]
        %v1870 = vld [vmem:[#allocation5 + $0x40] sm:$0xff]
        %v1871 = vld [vmem:[#allocation5 + $0x48] sm:$0xff]
        %v1872 = vld [vmem:[#allocation5 + $0x50] sm:$0xff]
        %v1873 = vld [vmem:[#allocation5 + $0x58] sm:$0xff]
        %v1874 = vld [vmem:[#allocation5 + $0x60] sm:$0xff]
        %v1875 = vld [vmem:[#allocation5 + $0x68] sm:$0xff]
        %v1876 = vld [vmem:[#allocation5 + $0x70] sm:$0xff]
        %v1877 = vld [vmem:[#allocation5 + $0x78] sm:$0xff]
        %v1878 = vld [vmem:[#allocation5 + $0x80] sm:$0xff]
        %v1879 = vld [vmem:[#allocation5 + $0x88] sm:$0xff]
        %v1880 = vld [vmem:[#allocation5 + $0x90] sm:$0xff]
        %v1881 = vld [vmem:[#allocation5 + $0x98] sm:$0xff]
        %v1882 = vld [vmem:[#allocation5 + $0xa0] sm:$0xff]
        %v1883 = vld [vmem:[#allocation5 + $0xa8] sm:$0xff]
        %v1884 = vld [vmem:[#allocation5 + $0xb0] sm:$0xff]
        %v1885 = vld [vmem:[#allocation5 + $0xb8] sm:$0xff]
        %v1886 = vld [vmem:[#allocation5 + $0xc0] sm:$0xff]
        %v1887 = vld [vmem:[#allocation5 + $0xc8] sm:$0xff]
        %v1888 = vld [vmem:[#allocation5 + $0xd0] sm:$0xff]
        %v1889 = vld [vmem:[#allocation5 + $0xd8] sm:$0xff]
        %v1890 = vld [vmem:[#allocation5 + $0xe0] sm:$0xff]
        %v1891 = vld [vmem:[#allocation5 + $0xe8] sm:$0xff]
        %v1892 = vld [vmem:[#allocation5 + $0xf0] sm:$0xff]
        %v1893 = vld [vmem:[#allocation5 + $0xf8] sm:$0xff]
        %v1894 = vld [vmem:[#allocation5 + $0x100] sm:$0xff]
        %v1895 = vld [vmem:[#allocation5 + $0x108] sm:$0xff]
        %v1896 = vld [vmem:[#allocation5 + $0x110] sm:$0xff]
        %v1897 = vld [vmem:[#allocation5 + $0x118] sm:$0xff]
        %v1898 = vld [vmem:[#allocation5 + $0x120] sm:$0xff]
        %v1899 = vld [vmem:[#allocation5 + $0x128] sm:$0xff]
        %v1900 = vld [vmem:[#allocation5 + $0x130] sm:$0xff]
        %v1901 = vld [vmem:[#allocation5 + $0x138] sm:$0xff]
        %v1902 = vld [vmem:[#allocation5 + $0x140] sm:$0xff]
        %v1903 = vld [vmem:[#allocation5 + $0x148] sm:$0xff]
        %v1904 = vld [vmem:[#allocation5 + $0x150] sm:$0xff]
        %v1905 = vld [vmem:[#allocation5 + $0x158] sm:$0xff]
        %v1906 = vld [vmem:[#allocation5 + $0x160] sm:$0xff]
        %v1907 = vld [vmem:[#allocation5 + $0x168] sm:$0xff]
        %v1908 = vld [vmem:[#allocation5 + $0x170] sm:$0xff]
        %v1909 = vld [vmem:[#allocation5 + $0x178] sm:$0xff]
        %v1910 = vld [vmem:[#allocation5 + $0x180] sm:$0xff]
        %v1911 = vld [vmem:[#allocation5 + $0x188] sm:$0xff]
        %v1912 = vld [vmem:[#allocation5 + $0x190] sm:$0xff]
        %v1913 = vld [vmem:[#allocation5 + $0x198] sm:$0xff]
        %v1914 = vld [vmem:[#allocation5 + $0x1a0] sm:$0xff]
        %v1915 = vld [vmem:[#allocation5 + $0x1a8] sm:$0xff]
        %v1916 = vld [vmem:[#allocation5 + $0x1b0] sm:$0xff]
        %v1917 = vld [vmem:[#allocation5 + $0x1b8] sm:$0xff]
        %v1918 = vld [vmem:[#allocation5 + $0x1c0] sm:$0xff]
        %v1919 = vld [vmem:[#allocation5 + $0x1c8] sm:$0xff]
        %v1920 = vld [vmem:[#allocation5 + $0x1d0] sm:$0xff]
        %v1921 = vld [vmem:[#allocation5 + $0x1d8] sm:$0xff]
        %v1922 = vld [vmem:[#allocation5 + $0x1e0] sm:$0xff]
        %v1923 = vld [vmem:[#allocation5 + $0x1e8] sm:$0xff]
        %v1924 = vld [vmem:[#allocation5 + $0x1f0] sm:$0xff]
        %v1925 = vld [vmem:[#allocation5 + $0x1f8] sm:$0xff]
        %v1926 = vld [vmem:[#allocation5 + $0x200] sm:$0xff]
        %v1927 = vld [vmem:[#allocation5 + $0x208] sm:$0xff]
        %v1928 = vld [vmem:[#allocation5 + $0x210] sm:$0xff]
        %v1929 = vld [vmem:[#allocation5 + $0x218] sm:$0xff]
        %v1930 = vld [vmem:[#allocation5 + $0x220] sm:$0xff]
        %v1931 = vld [vmem:[#allocation5 + $0x228] sm:$0xff]
        %v1932 = vld [vmem:[#allocation5 + $0x230] sm:$0xff]
        %v1933 = vld [vmem:[#allocation5 + $0x238] sm:$0xff]
        %v1934 = vld [vmem:[#allocation5 + $0x240] sm:$0xff]
        %v1935 = vld [vmem:[#allocation5 + $0x248] sm:$0xff]
        %v1936 = vld [vmem:[#allocation5 + $0x250] sm:$0xff]
        %v1937 = vld [vmem:[#allocation5 + $0x258] sm:$0xff]
        %v1938 = vld [vmem:[#allocation5 + $0x260] sm:$0xff]
        %v1939 = vld [vmem:[#allocation5 + $0x268] sm:$0xff]
        %v1940 = vld [vmem:[#allocation5 + $0x270] sm:$0xff]
        %v1941 = vld [vmem:[#allocation5 + $0x278] sm:$0xff]
        %v1942 = vld [vmem:[#allocation5 + $0x280] sm:$0xff]
        %v1943 = vld [vmem:[#allocation5 + $0x288] sm:$0xff]
        %v1944 = vld [vmem:[#allocation5 + $0x290] sm:$0xff]
        %v1945 = vld [vmem:[#allocation5 + $0x298] sm:$0xff]
        %v1946 = vld [vmem:[#allocation5 + $0x2a0] sm:$0xff]
        %v1947 = vld [vmem:[#allocation5 + $0x2a8] sm:$0xff]
        %v1948 = vld [vmem:[#allocation5 + $0x2b0] sm:$0xff]
        %v1949 = vld [vmem:[#allocation5 + $0x2b8] sm:$0xff]
        %v1950 = vld [vmem:[#allocation5 + $0x2c0] sm:$0xff]
        %v1951 = vld [vmem:[#allocation5 + $0x2c8] sm:$0xff]
        %v1952 = vld [vmem:[#allocation5 + $0x2d0] sm:$0xff]
        %v1953 = vld [vmem:[#allocation5 + $0x2d8] sm:$0xff]
        %v1954 = vld [vmem:[#allocation5 + $0x2e0] sm:$0xff]
        %v1955 = vld [vmem:[#allocation5 + $0x2e8] sm:$0xff]
        %v1956 = vld [vmem:[#allocation5 + $0x2f0] sm:$0xff]
        %v1957 = vld [vmem:[#allocation5 + $0x2f8] sm:$0xff]
        %v1958 = vld [vmem:[#allocation5 + $0x300] sm:$0xff]
        %v1959 = vld [vmem:[#allocation5 + $0x308] sm:$0xff]
        %v1960 = vld [vmem:[#allocation5 + $0x310] sm:$0xff]
        %v1961 = vld [vmem:[#allocation5 + $0x318] sm:$0xff]
        %v1962 = vld [vmem:[#allocation5 + $0x320] sm:$0xff]
        %v1963 = vld [vmem:[#allocation5 + $0x328] sm:$0xff]
        %v1964 = vld [vmem:[#allocation5 + $0x330] sm:$0xff]
        %v1965 = vld [vmem:[#allocation5 + $0x338] sm:$0xff]
        %v1966 = vld [vmem:[#allocation5 + $0x340] sm:$0xff]
        %v1967 = vld [vmem:[#allocation5 + $0x348] sm:$0xff]
        %v1968 = vld [vmem:[#allocation5 + $0x350] sm:$0xff]
        %v1969 = vld [vmem:[#allocation5 + $0x358] sm:$0xff]
        %v1970 = vld [vmem:[#allocation5 + $0x360] sm:$0xff]
        %v1971 = vld [vmem:[#allocation5 + $0x368] sm:$0xff]
        %v1972 = vld [vmem:[#allocation5 + $0x370] sm:$0xff]
        %v1973 = vld [vmem:[#allocation5 + $0x378] sm:$0xff]
        %v1974 = vld [vmem:[#allocation5 + $0x380] sm:$0xff]
        %v1975 = vld [vmem:[#allocation5 + $0x388] sm:$0xff]
        %v1976 = vld [vmem:[#allocation5 + $0x390] sm:$0xff]
        %v1977 = vld [vmem:[#allocation5 + $0x398] sm:$0xff]
        %v1978 = vld [vmem:[#allocation5 + $0x3a0] sm:$0xff]
        %v1979 = vld [vmem:[#allocation5 + $0x3a8] sm:$0xff]
        %v1980 = vld [vmem:[#allocation5 + $0x3b0] sm:$0xff]
        %v1981 = vld [vmem:[#allocation5 + $0x3b8] sm:$0xff]
        %v1982 = vld [vmem:[#allocation5 + $0x3c0] sm:$0xff]
        %v1983 = vld [vmem:[#allocation5 + $0x3c8] sm:$0xff]
        %v1984 = vld [vmem:[#allocation5 + $0x3d0] sm:$0xff]
        %v1985 = vld [vmem:[#allocation5 + $0x3d8] sm:$0xff]
        %v1986 = vld [vmem:[#allocation5 + $0x3e0] sm:$0xff]
        %v1987 = vld [vmem:[#allocation5 + $0x3e8] sm:$0xff]
        %v1988 = vld [vmem:[#allocation5 + $0x3f0] sm:$0xff]
        %v1989 = vld [vmem:[#allocation5 + $0x3f8] sm:$0xff]
        %v1990 = vld [vmem:[%s395] sm:$0xff]
        %v1991 = vld [vmem:[%s395 + $0x8] sm:$0xff]
        %v1994 = vlaneseq
        %v1995 = vshrl.u32 %v1994, 7
        %v1996 = vsub.s32 0, %v1995
        %v1997 = vrot.slane %v1990, %v1996
        %v1998 = vlaneseq
        %v1999 = vshrl.u32 %v1998, 7
        %v2000 = vsub.s32 1, %v1999
        %v2001 = vrot.slane %v1990, %v2000
        %v2002 = vlaneseq
        %v2003 = vshrl.u32 %v2002, 7
        %v2004 = vsub.s32 2, %v2003
        %v2005 = vrot.slane %v1990, %v2004
        %v2006 = vlaneseq
        %v2007 = vshrl.u32 %v2006, 7
        %v2008 = vsub.s32 3, %v2007
        %v2009 = vrot.slane %v1990, %v2008
        %v2010 = vlaneseq
        %v2011 = vshrl.u32 %v2010, 7
        %v2012 = vsub.s32 4, %v2011
        %v2013 = vrot.slane %v1990, %v2012
        %v2014 = vlaneseq
        %v2015 = vshrl.u32 %v2014, 7
        %v2016 = vsub.s32 5, %v2015
        %v2017 = vrot.slane %v1990, %v2016
        %v2018 = vlaneseq
        %v2019 = vshrl.u32 %v2018, 7
        %v2020 = vsub.s32 6, %v2019
        %v2021 = vrot.slane %v1990, %v2020
        %v2022 = vlaneseq
        %v2023 = vshrl.u32 %v2022, 7
        %v2024 = vsub.s32 7, %v2023
        %v2025 = vrot.slane %v1990, %v2024
        %v2026 = vlaneseq
        %v2027 = vshrl.u32 %v2026, 7
        %v2028 = vsub.s32 0, %v2027
        %v2029 = vrot.slane %v1991, %v2028
        %v2030 = vlaneseq
        %v2031 = vshrl.u32 %v2030, 7
        %v2032 = vsub.s32 1, %v2031
        %v2033 = vrot.slane %v1991, %v2032
        %v2034 = vlaneseq
        %v2035 = vshrl.u32 %v2034, 7
        %v2036 = vsub.s32 2, %v2035
        %v2037 = vrot.slane %v1991, %v2036
        %v2038 = vlaneseq
        %v2039 = vshrl.u32 %v2038, 7
        %v2040 = vsub.s32 3, %v2039
        %v2041 = vrot.slane %v1991, %v2040
        %v2042 = vlaneseq
        %v2043 = vshrl.u32 %v2042, 7
        %v2044 = vsub.s32 4, %v2043
        %v2045 = vrot.slane %v1991, %v2044
        %v2046 = vlaneseq
        %v2047 = vshrl.u32 %v2046, 7
        %v2048 = vsub.s32 5, %v2047
        %v2049 = vrot.slane %v1991, %v2048
        %v2050 = vlaneseq
        %v2051 = vshrl.u32 %v2050, 7
        %v2052 = vsub.s32 6, %v2051
        %v2053 = vrot.slane %v1991, %v2052
        %v2054 = vlaneseq
        %v2055 = vshrl.u32 %v2054, 7
        %v2056 = vsub.s32 7, %v2055
        %v2057 = vrot.slane %v1991, %v2056
        %v2202 = vunpack.c.l.b16 %v1862
        %v2203 = vunpack.c.h.b16 %v1862
        %v2204 = vunpack.c.l.b16 %v1863
        %v2205 = vunpack.c.h.b16 %v1863
        %v2206 = vunpack.c.l.b16 %v1864
        %v2207 = vunpack.c.h.b16 %v1864
        %v2208 = vunpack.c.l.b16 %v1865
        %v2209 = vunpack.c.h.b16 %v1865
        %v2210 = vunpack.c.l.b16 %v1866
        %v2211 = vunpack.c.h.b16 %v1866
        %v2212 = vunpack.c.l.b16 %v1867
        %v2213 = vunpack.c.h.b16 %v1867
        %v2214 = vunpack.c.l.b16 %v1868
        %v2215 = vunpack.c.h.b16 %v1868
        %v2216 = vunpack.c.l.b16 %v1869
        %v2217 = vunpack.c.h.b16 %v1869
        %v2218 = vunpack.c.l.b16 %v1870
        %v2219 = vunpack.c.h.b16 %v1870
        %v2220 = vunpack.c.l.b16 %v1871
        %v2221 = vunpack.c.h.b16 %v1871
        %v2222 = vunpack.c.l.b16 %v1872
        %v2223 = vunpack.c.h.b16 %v1872
        %v2224 = vunpack.c.l.b16 %v1873
        %v2225 = vunpack.c.h.b16 %v1873
        %v2226 = vunpack.c.l.b16 %v1874
        %v2227 = vunpack.c.h.b16 %v1874
        %v2228 = vunpack.c.l.b16 %v1875
        %v2229 = vunpack.c.h.b16 %v1875
        %v2230 = vunpack.c.l.b16 %v1876
        %v2231 = vunpack.c.h.b16 %v1876
        %v2232 = vunpack.c.l.b16 %v1877
        %v2233 = vunpack.c.h.b16 %v1877
        %v2234 = vunpack.c.l.b16 %v1878
        %v2235 = vunpack.c.h.b16 %v1878
        %v2236 = vunpack.c.l.b16 %v1879
        %v2237 = vunpack.c.h.b16 %v1879
        %v2238 = vunpack.c.l.b16 %v1880
        %v2239 = vunpack.c.h.b16 %v1880
        %v2240 = vunpack.c.l.b16 %v1881
        %v2241 = vunpack.c.h.b16 %v1881
        %v2242 = vunpack.c.l.b16 %v1882
        %v2243 = vunpack.c.h.b16 %v1882
        %v2244 = vunpack.c.l.b16 %v1883
        %v2245 = vunpack.c.h.b16 %v1883
        %v2246 = vunpack.c.l.b16 %v1884
        %v2247 = vunpack.c.h.b16 %v1884
        %v2248 = vunpack.c.l.b16 %v1885
        %v2249 = vunpack.c.h.b16 %v1885
        %v2250 = vunpack.c.l.b16 %v1886
        %v2251 = vunpack.c.h.b16 %v1886
        %v2252 = vunpack.c.l.b16 %v1887
        %v2253 = vunpack.c.h.b16 %v1887
        %v2254 = vunpack.c.l.b16 %v1888
        %v2255 = vunpack.c.h.b16 %v1888
        %v2256 = vunpack.c.l.b16 %v1889
        %v2257 = vunpack.c.h.b16 %v1889
        %v2258 = vunpack.c.l.b16 %v1890
        %v2259 = vunpack.c.h.b16 %v1890
        %v2260 = vunpack.c.l.b16 %v1891
        %v2261 = vunpack.c.h.b16 %v1891
        %v2262 = vunpack.c.l.b16 %v1892
        %v2263 = vunpack.c.h.b16 %v1892
        %v2264 = vunpack.c.l.b16 %v1893
        %v2265 = vunpack.c.h.b16 %v1893
        %v2266 = vunpack.c.l.b16 %v1894
        %v2267 = vunpack.c.h.b16 %v1894
        %v2268 = vunpack.c.l.b16 %v1895
        %v2269 = vunpack.c.h.b16 %v1895
        %v2270 = vunpack.c.l.b16 %v1896
        %v2271 = vunpack.c.h.b16 %v1896
        %v2272 = vunpack.c.l.b16 %v1897
        %v2273 = vunpack.c.h.b16 %v1897
        %v2274 = vunpack.c.l.b16 %v1898
        %v2275 = vunpack.c.h.b16 %v1898
        %v2276 = vunpack.c.l.b16 %v1899
        %v2277 = vunpack.c.h.b16 %v1899
        %v2278 = vunpack.c.l.b16 %v1900
        %v2279 = vunpack.c.h.b16 %v1900
        %v2280 = vunpack.c.l.b16 %v1901
        %v2281 = vunpack.c.h.b16 %v1901
        %v2282 = vunpack.c.l.b16 %v1902
        %v2283 = vunpack.c.h.b16 %v1902
        %v2284 = vunpack.c.l.b16 %v1903
        %v2285 = vunpack.c.h.b16 %v1903
        %v2286 = vunpack.c.l.b16 %v1904
        %v2287 = vunpack.c.h.b16 %v1904
        %v2288 = vunpack.c.l.b16 %v1905
        %v2289 = vunpack.c.h.b16 %v1905
        %v2290 = vunpack.c.l.b16 %v1906
        %v2291 = vunpack.c.h.b16 %v1906
        %v2292 = vunpack.c.l.b16 %v1907
        %v2293 = vunpack.c.h.b16 %v1907
        %v2294 = vunpack.c.l.b16 %v1908
        %v2295 = vunpack.c.h.b16 %v1908
        %v2296 = vunpack.c.l.b16 %v1909
        %v2297 = vunpack.c.h.b16 %v1909
        %v2298 = vunpack.c.l.b16 %v1910
        %v2299 = vunpack.c.h.b16 %v1910
        %v2300 = vunpack.c.l.b16 %v1911
        %v2301 = vunpack.c.h.b16 %v1911
        %v2302 = vunpack.c.l.b16 %v1912
        %v2303 = vunpack.c.h.b16 %v1912
        %v2304 = vunpack.c.l.b16 %v1913
        %v2305 = vunpack.c.h.b16 %v1913
        %v2306 = vunpack.c.l.b16 %v1914
        %v2307 = vunpack.c.h.b16 %v1914
        %v2308 = vunpack.c.l.b16 %v1915
        %v2309 = vunpack.c.h.b16 %v1915
        %v2310 = vunpack.c.l.b16 %v1916
        %v2311 = vunpack.c.h.b16 %v1916
        %v2312 = vunpack.c.l.b16 %v1917
        %v2313 = vunpack.c.h.b16 %v1917
        %v2314 = vunpack.c.l.b16 %v1918
        %v2315 = vunpack.c.h.b16 %v1918
        %v2316 = vunpack.c.l.b16 %v1919
        %v2317 = vunpack.c.h.b16 %v1919
        %v2318 = vunpack.c.l.b16 %v1920
        %v2319 = vunpack.c.h.b16 %v1920
        %v2320 = vunpack.c.l.b16 %v1921
        %v2321 = vunpack.c.h.b16 %v1921
        %v2322 = vunpack.c.l.b16 %v1922
        %v2323 = vunpack.c.h.b16 %v1922
        %v2324 = vunpack.c.l.b16 %v1923
        %v2325 = vunpack.c.h.b16 %v1923
        %v2326 = vunpack.c.l.b16 %v1924
        %v2327 = vunpack.c.h.b16 %v1924
        %v2328 = vunpack.c.l.b16 %v1925
        %v2329 = vunpack.c.h.b16 %v1925
        %v2330 = vunpack.c.l.b16 %v1926
        %v2331 = vunpack.c.h.b16 %v1926
        %v2332 = vunpack.c.l.b16 %v1927
        %v2333 = vunpack.c.h.b16 %v1927
        %v2334 = vunpack.c.l.b16 %v1928
        %v2335 = vunpack.c.h.b16 %v1928
        %v2336 = vunpack.c.l.b16 %v1929
        %v2337 = vunpack.c.h.b16 %v1929
        %v2338 = vunpack.c.l.b16 %v1930
        %v2339 = vunpack.c.h.b16 %v1930
        %v2340 = vunpack.c.l.b16 %v1931
        %v2341 = vunpack.c.h.b16 %v1931
        %v2342 = vunpack.c.l.b16 %v1932
        %v2343 = vunpack.c.h.b16 %v1932
        %v2344 = vunpack.c.l.b16 %v1933
        %v2345 = vunpack.c.h.b16 %v1933
        %v2346 = vunpack.c.l.b16 %v1934
        %v2347 = vunpack.c.h.b16 %v1934
        %v2348 = vunpack.c.l.b16 %v1935
        %v2349 = vunpack.c.h.b16 %v1935
        %v2350 = vunpack.c.l.b16 %v1936
        %v2351 = vunpack.c.h.b16 %v1936
        %v2352 = vunpack.c.l.b16 %v1937
        %v2353 = vunpack.c.h.b16 %v1937
        %v2354 = vunpack.c.l.b16 %v1938
        %v2355 = vunpack.c.h.b16 %v1938
        %v2356 = vunpack.c.l.b16 %v1939
        %v2357 = vunpack.c.h.b16 %v1939
        %v2358 = vunpack.c.l.b16 %v1940
        %v2359 = vunpack.c.h.b16 %v1940
        %v2360 = vunpack.c.l.b16 %v1941
        %v2361 = vunpack.c.h.b16 %v1941
        %v2362 = vunpack.c.l.b16 %v1942
        %v2363 = vunpack.c.h.b16 %v1942
        %v2364 = vunpack.c.l.b16 %v1943
        %v2365 = vunpack.c.h.b16 %v1943
        %v2366 = vunpack.c.l.b16 %v1944
        %v2367 = vunpack.c.h.b16 %v1944
        %v2368 = vunpack.c.l.b16 %v1945
        %v2369 = vunpack.c.h.b16 %v1945
        %v2370 = vunpack.c.l.b16 %v1946
        %v2371 = vunpack.c.h.b16 %v1946
        %v2372 = vunpack.c.l.b16 %v1947
        %v2373 = vunpack.c.h.b16 %v1947
        %v2374 = vunpack.c.l.b16 %v1948
        %v2375 = vunpack.c.h.b16 %v1948
        %v2376 = vunpack.c.l.b16 %v1949
        %v2377 = vunpack.c.h.b16 %v1949
        %v2378 = vunpack.c.l.b16 %v1950
        %v2379 = vunpack.c.h.b16 %v1950
        %v2380 = vunpack.c.l.b16 %v1951
        %v2381 = vunpack.c.h.b16 %v1951
        %v2382 = vunpack.c.l.b16 %v1952
        %v2383 = vunpack.c.h.b16 %v1952
        %v2384 = vunpack.c.l.b16 %v1953
        %v2385 = vunpack.c.h.b16 %v1953
        %v2386 = vunpack.c.l.b16 %v1954
        %v2387 = vunpack.c.h.b16 %v1954
        %v2388 = vunpack.c.l.b16 %v1955
        %v2389 = vunpack.c.h.b16 %v1955
        %v2390 = vunpack.c.l.b16 %v1956
        %v2391 = vunpack.c.h.b16 %v1956
        %v2392 = vunpack.c.l.b16 %v1957
        %v2393 = vunpack.c.h.b16 %v1957
        %v2394 = vunpack.c.l.b16 %v1958
        %v2395 = vunpack.c.h.b16 %v1958
        %v2396 = vunpack.c.l.b16 %v1959
        %v2397 = vunpack.c.h.b16 %v1959
        %v2398 = vunpack.c.l.b16 %v1960
        %v2399 = vunpack.c.h.b16 %v1960
        %v2400 = vunpack.c.l.b16 %v1961
        %v2401 = vunpack.c.h.b16 %v1961
        %v2402 = vunpack.c.l.b16 %v1962
        %v2403 = vunpack.c.h.b16 %v1962
        %v2404 = vunpack.c.l.b16 %v1963
        %v2405 = vunpack.c.h.b16 %v1963
        %v2406 = vunpack.c.l.b16 %v1964
        %v2407 = vunpack.c.h.b16 %v1964
        %v2408 = vunpack.c.l.b16 %v1965
        %v2409 = vunpack.c.h.b16 %v1965
        %v2410 = vunpack.c.l.b16 %v1966
        %v2411 = vunpack.c.h.b16 %v1966
        %v2412 = vunpack.c.l.b16 %v1967
        %v2413 = vunpack.c.h.b16 %v1967
        %v2414 = vunpack.c.l.b16 %v1968
        %v2415 = vunpack.c.h.b16 %v1968
        %v2416 = vunpack.c.l.b16 %v1969
        %v2417 = vunpack.c.h.b16 %v1969
        %v2418 = vunpack.c.l.b16 %v1970
        %v2419 = vunpack.c.h.b16 %v1970
        %v2420 = vunpack.c.l.b16 %v1971
        %v2421 = vunpack.c.h.b16 %v1971
        %v2422 = vunpack.c.l.b16 %v1972
        %v2423 = vunpack.c.h.b16 %v1972
        %v2424 = vunpack.c.l.b16 %v1973
        %v2425 = vunpack.c.h.b16 %v1973
        %v2426 = vunpack.c.l.b16 %v1974
        %v2427 = vunpack.c.h.b16 %v1974
        %v2428 = vunpack.c.l.b16 %v1975
        %v2429 = vunpack.c.h.b16 %v1975
        %v2430 = vunpack.c.l.b16 %v1976
        %v2431 = vunpack.c.h.b16 %v1976
        %v2432 = vunpack.c.l.b16 %v1977
        %v2433 = vunpack.c.h.b16 %v1977
        %v2434 = vunpack.c.l.b16 %v1978
        %v2435 = vunpack.c.h.b16 %v1978
        %v2436 = vunpack.c.l.b16 %v1979
        %v2437 = vunpack.c.h.b16 %v1979
        %v2438 = vunpack.c.l.b16 %v1980
        %v2439 = vunpack.c.h.b16 %v1980
        %v2440 = vunpack.c.l.b16 %v1981
        %v2441 = vunpack.c.h.b16 %v1981
        %v2442 = vunpack.c.l.b16 %v1982
        %v2443 = vunpack.c.h.b16 %v1982
        %v2444 = vunpack.c.l.b16 %v1983
        %v2445 = vunpack.c.h.b16 %v1983
        %v2446 = vunpack.c.l.b16 %v1984
        %v2447 = vunpack.c.h.b16 %v1984
        %v2448 = vunpack.c.l.b16 %v1985
        %v2449 = vunpack.c.h.b16 %v1985
        %v2450 = vunpack.c.l.b16 %v1986
        %v2451 = vunpack.c.h.b16 %v1986
        %v2452 = vunpack.c.l.b16 %v1987
        %v2453 = vunpack.c.h.b16 %v1987
        %v2454 = vunpack.c.l.b16 %v1988
        %v2455 = vunpack.c.h.b16 %v1988
        %v2456 = vunpack.c.l.b16 %v1989
        %v2457 = vunpack.c.h.b16 %v1989
        %v2458 = vpack.c.b16 %v2218, %v2202
        %v2459 = vpack.c.b16 %v2219, %v2203
        %v2460 = vpack.c.b16 %v2220, %v2204
        %v2461 = vpack.c.b16 %v2221, %v2205
        %v2462 = vpack.c.b16 %v2222, %v2206
        %v2463 = vpack.c.b16 %v2223, %v2207
        %v2464 = vpack.c.b16 %v2224, %v2208
        %v2465 = vpack.c.b16 %v2225, %v2209
        %v2466 = vpack.c.b16 %v2226, %v2210
        %v2467 = vpack.c.b16 %v2227, %v2211
        %v2468 = vpack.c.b16 %v2228, %v2212
        %v2469 = vpack.c.b16 %v2229, %v2213
        %v2470 = vpack.c.b16 %v2230, %v2214
        %v2471 = vpack.c.b16 %v2231, %v2215
        %v2472 = vpack.c.b16 %v2232, %v2216
        %v2473 = vpack.c.b16 %v2233, %v2217
        %v2474 = vpack.c.b16 %v2250, %v2234
        %v2475 = vpack.c.b16 %v2251, %v2235
        %v2476 = vpack.c.b16 %v2252, %v2236
        %v2477 = vpack.c.b16 %v2253, %v2237
        %v2478 = vpack.c.b16 %v2254, %v2238
        %v2479 = vpack.c.b16 %v2255, %v2239
        %v2480 = vpack.c.b16 %v2256, %v2240
        %v2481 = vpack.c.b16 %v2257, %v2241
        %v2482 = vpack.c.b16 %v2258, %v2242
        %v2483 = vpack.c.b16 %v2259, %v2243
        %v2484 = vpack.c.b16 %v2260, %v2244
        %v2485 = vpack.c.b16 %v2261, %v2245
        %v2486 = vpack.c.b16 %v2262, %v2246
        %v2487 = vpack.c.b16 %v2263, %v2247
        %v2488 = vpack.c.b16 %v2264, %v2248
        %v2489 = vpack.c.b16 %v2265, %v2249
        %v2490 = vpack.c.b16 %v2282, %v2266
        %v2491 = vpack.c.b16 %v2283, %v2267
        %v2492 = vpack.c.b16 %v2284, %v2268
        %v2493 = vpack.c.b16 %v2285, %v2269
        %v2494 = vpack.c.b16 %v2286, %v2270
        %v2495 = vpack.c.b16 %v2287, %v2271
        %v2496 = vpack.c.b16 %v2288, %v2272
        %v2497 = vpack.c.b16 %v2289, %v2273
        %v2498 = vpack.c.b16 %v2290, %v2274
        %v2499 = vpack.c.b16 %v2291, %v2275
        %v2500 = vpack.c.b16 %v2292, %v2276
        %v2501 = vpack.c.b16 %v2293, %v2277
        %v2502 = vpack.c.b16 %v2294, %v2278
        %v2503 = vpack.c.b16 %v2295, %v2279
        %v2504 = vpack.c.b16 %v2296, %v2280
        %v2505 = vpack.c.b16 %v2297, %v2281
        %v2506 = vpack.c.b16 %v2314, %v2298
        %v2507 = vpack.c.b16 %v2315, %v2299
        %v2508 = vpack.c.b16 %v2316, %v2300
        %v2509 = vpack.c.b16 %v2317, %v2301
        %v2510 = vpack.c.b16 %v2318, %v2302
        %v2511 = vpack.c.b16 %v2319, %v2303
        %v2512 = vpack.c.b16 %v2320, %v2304
        %v2513 = vpack.c.b16 %v2321, %v2305
        %v2514 = vpack.c.b16 %v2322, %v2306
        %v2515 = vpack.c.b16 %v2323, %v2307
        %v2516 = vpack.c.b16 %v2324, %v2308
        %v2517 = vpack.c.b16 %v2325, %v2309
        %v2518 = vpack.c.b16 %v2326, %v2310
        %v2519 = vpack.c.b16 %v2327, %v2311
        %v2520 = vpack.c.b16 %v2328, %v2312
        %v2521 = vpack.c.b16 %v2329, %v2313
        %v2522 = vpack.c.b16 %v2346, %v2330
        %v2523 = vpack.c.b16 %v2347, %v2331
        %v2524 = vpack.c.b16 %v2348, %v2332
        %v2525 = vpack.c.b16 %v2349, %v2333
        %v2526 = vpack.c.b16 %v2350, %v2334
        %v2527 = vpack.c.b16 %v2351, %v2335
        %v2528 = vpack.c.b16 %v2352, %v2336
        %v2529 = vpack.c.b16 %v2353, %v2337
        %v2530 = vpack.c.b16 %v2354, %v2338
        %v2531 = vpack.c.b16 %v2355, %v2339
        %v2532 = vpack.c.b16 %v2356, %v2340
        %v2533 = vpack.c.b16 %v2357, %v2341
        %v2534 = vpack.c.b16 %v2358, %v2342
        %v2535 = vpack.c.b16 %v2359, %v2343
        %v2536 = vpack.c.b16 %v2360, %v2344
        %v2537 = vpack.c.b16 %v2361, %v2345
        %v2538 = vpack.c.b16 %v2378, %v2362
        %v2539 = vpack.c.b16 %v2379, %v2363
        %v2540 = vpack.c.b16 %v2380, %v2364
        %v2541 = vpack.c.b16 %v2381, %v2365
        %v2542 = vpack.c.b16 %v2382, %v2366
        %v2543 = vpack.c.b16 %v2383, %v2367
        %v2544 = vpack.c.b16 %v2384, %v2368
        %v2545 = vpack.c.b16 %v2385, %v2369
        %v2546 = vpack.c.b16 %v2386, %v2370
        %v2547 = vpack.c.b16 %v2387, %v2371
        %v2548 = vpack.c.b16 %v2388, %v2372
        %v2549 = vpack.c.b16 %v2389, %v2373
        %v2550 = vpack.c.b16 %v2390, %v2374
        %v2551 = vpack.c.b16 %v2391, %v2375
        %v2552 = vpack.c.b16 %v2392, %v2376
        %v2553 = vpack.c.b16 %v2393, %v2377
        %v2554 = vpack.c.b16 %v2410, %v2394
        %v2555 = vpack.c.b16 %v2411, %v2395
        %v2556 = vpack.c.b16 %v2412, %v2396
        %v2557 = vpack.c.b16 %v2413, %v2397
        %v2558 = vpack.c.b16 %v2414, %v2398
        %v2559 = vpack.c.b16 %v2415, %v2399
        %v2560 = vpack.c.b16 %v2416, %v2400
        %v2561 = vpack.c.b16 %v2417, %v2401
        %v2562 = vpack.c.b16 %v2418, %v2402
        %v2563 = vpack.c.b16 %v2419, %v2403
        %v2564 = vpack.c.b16 %v2420, %v2404
        %v2565 = vpack.c.b16 %v2421, %v2405
        %v2566 = vpack.c.b16 %v2422, %v2406
        %v2567 = vpack.c.b16 %v2423, %v2407
        %v2568 = vpack.c.b16 %v2424, %v2408
        %v2569 = vpack.c.b16 %v2425, %v2409
        %v2570 = vpack.c.b16 %v2442, %v2426
        %v2571 = vpack.c.b16 %v2443, %v2427
        %v2572 = vpack.c.b16 %v2444, %v2428
        %v2573 = vpack.c.b16 %v2445, %v2429
        %v2574 = vpack.c.b16 %v2446, %v2430
        %v2575 = vpack.c.b16 %v2447, %v2431
        %v2576 = vpack.c.b16 %v2448, %v2432
        %v2577 = vpack.c.b16 %v2449, %v2433
        %v2578 = vpack.c.b16 %v2450, %v2434
        %v2579 = vpack.c.b16 %v2451, %v2435
        %v2580 = vpack.c.b16 %v2452, %v2436
        %v2581 = vpack.c.b16 %v2453, %v2437
        %v2582 = vpack.c.b16 %v2454, %v2438
        %v2583 = vpack.c.b16 %v2455, %v2439
        %v2584 = vpack.c.b16 %v2456, %v2440
        %v2585 = vpack.c.b16 %v2457, %v2441
        %2714 = vmatprep.subr.bf16.mxu0 %v2571
        %2715 = vmatpush1.bf16.msra.mxu0 %v2570
        %2716 = vmatprep.subr.bf16.mxu0 %v2555
        %2717 = vmatpush1.bf16.msra.mxu0 %v2554
        %2718 = vmatprep.subr.bf16.mxu0 %v2539
        %2719 = vmatpush1.bf16.msra.mxu0 %v2538
        %2720 = vmatprep.subr.bf16.mxu0 %v2523
        %2721 = vmatpush1.bf16.msra.mxu0 %v2522
        %2722 = vmatprep.subr.bf16.mxu0 %v2507
        %2723 = vmatpush1.bf16.msra.mxu0 %v2506
        %2724 = vmatprep.subr.bf16.mxu0 %v2491
        %2725 = vmatpush1.bf16.msra.mxu0 %v2490
        %2726 = vmatprep.subr.bf16.mxu0 %v2475
        %2727 = vmatpush1.bf16.msra.mxu0 %v2474
        %2728 = vmatprep.subr.bf16.mxu0 %v2459
        %2729 = vmatpush1.bf16.msra.mxu0 %v2458
        %2730 = vmatprep.subr.bf16.mxu0 0
        %2731 = vmatpush2.bf16.msra.mxu0 0
        %2732 = vmatprep.subr.bf16.mxu0 0
        %2733 = vmatpush2.bf16.msra.mxu0 0
        %2734 = vmatprep.subr.bf16.mxu0 0
        %2735 = vmatpush2.bf16.msra.mxu0 0
        %2736 = vmatprep.subr.bf16.mxu0 0
        %2737 = vmatpush2.bf16.msra.mxu0 0
        %2738 = vmatprep.subr.bf16.mxu0 0
        %2739 = vmatpush2.bf16.msra.mxu0 0
        %2740 = vmatprep.subr.bf16.mxu0 0
        %2741 = vmatpush2.bf16.msra.mxu0 0
        %2742 = vmatprep.subr.bf16.mxu0 0
        %2743 = vmatpush2.bf16.msra.mxu0 0
        %2744 = vmatprep.subr.bf16.mxu0 0
        %2745 = vmatpush2.bf16.msra.mxu0 0
        %2746 = vmatprep.mubr.bf16.mxu0 0
        %2747 = vmatmul.mubr.bf16.gmra.mxu0 %v1861
        %v2748 = vpop.f32.mrf.mxu0
        %v2749 = vadd.f32 %v1997, %v2748
        %v2750 = vpop.f32.mrf.mxu0
        %v2751 = vadd.f32 %v2001, %v2750
        %v2752 = vpop.f32.mrf.mxu0
        %v2753 = vpop.f32.mrf.mxu0
        %2754 = vdwg.mxu0
        %2755 = vmatprep.subr.bf16.mxu0 %v2573
        %2756 = vmatpush1.bf16.msra.mxu0 %v2572
        %2757 = vmatprep.subr.bf16.mxu0 %v2557
        %2758 = vmatpush1.bf16.msra.mxu0 %v2556
        %2759 = vmatprep.subr.bf16.mxu0 %v2541
        %2760 = vmatpush1.bf16.msra.mxu0 %v2540
        %2761 = vmatprep.subr.bf16.mxu0 %v2525
        %2762 = vmatpush1.bf16.msra.mxu0 %v2524
        %2763 = vmatprep.subr.bf16.mxu0 %v2509
        %2764 = vmatpush1.bf16.msra.mxu0 %v2508
        %2765 = vmatprep.subr.bf16.mxu0 %v2493
        %2766 = vmatpush1.bf16.msra.mxu0 %v2492
        %2767 = vmatprep.subr.bf16.mxu0 %v2477
        %2768 = vmatpush1.bf16.msra.mxu0 %v2476
        %2769 = vmatprep.subr.bf16.mxu0 %v2461
        %2770 = vmatpush1.bf16.msra.mxu0 %v2460
        %2771 = vmatprep.subr.bf16.mxu0 0
        %2772 = vmatpush2.bf16.msra.mxu0 0
        %2773 = vmatprep.subr.bf16.mxu0 0
        %2774 = vmatpush2.bf16.msra.mxu0 0
        %2775 = vmatprep.subr.bf16.mxu0 0
        %2776 = vmatpush2.bf16.msra.mxu0 0
        %2777 = vmatprep.subr.bf16.mxu0 0
        %2778 = vmatpush2.bf16.msra.mxu0 0
        %2779 = vmatprep.subr.bf16.mxu0 0
        %2780 = vmatpush2.bf16.msra.mxu0 0
        %2781 = vmatprep.subr.bf16.mxu0 0
        %2782 = vmatpush2.bf16.msra.mxu0 0
        %2783 = vmatprep.subr.bf16.mxu0 0
        %2784 = vmatpush2.bf16.msra.mxu0 0
        %2785 = vmatprep.subr.bf16.mxu0 0
        %2786 = vmatpush2.bf16.msra.mxu0 0
        %2787 = vmatprep.mubr.bf16.mxu0 0
        %2788 = vmatmul.mubr.bf16.gmra.mxu0 %v1861
        %v2789 = vpop.f32.mrf.mxu0
        %v2790 = vadd.f32 %v2005, %v2789
        %v2791 = vpop.f32.mrf.mxu0
        %v2792 = vadd.f32 %v2009, %v2791
        %v2793 = vpop.f32.mrf.mxu0
        %v2794 = vpop.f32.mrf.mxu0
        %2795 = vdwg.mxu0
        %2796 = vmatprep.subr.bf16.mxu0 %v2575
        %2797 = vmatpush1.bf16.msra.mxu0 %v2574
        %2798 = vmatprep.subr.bf16.mxu0 %v2559
        %2799 = vmatpush1.bf16.msra.mxu0 %v2558
        %2800 = vmatprep.subr.bf16.mxu0 %v2543
        %2801 = vmatpush1.bf16.msra.mxu0 %v2542
        %2802 = vmatprep.subr.bf16.mxu0 %v2527
        %2803 = vmatpush1.bf16.msra.mxu0 %v2526
        %2804 = vmatprep.subr.bf16.mxu0 %v2511
        %2805 = vmatpush1.bf16.msra.mxu0 %v2510
        %2806 = vmatprep.subr.bf16.mxu0 %v2495
        %2807 = vmatpush1.bf16.msra.mxu0 %v2494
        %2808 = vmatprep.subr.bf16.mxu0 %v2479
        %2809 = vmatpush1.bf16.msra.mxu0 %v2478
        %2810 = vmatprep.subr.bf16.mxu0 %v2463
        %2811 = vmatpush1.bf16.msra.mxu0 %v2462
        %2812 = vmatprep.subr.bf16.mxu0 0
        %2813 = vmatpush2.bf16.msra.mxu0 0
        %2814 = vmatprep.subr.bf16.mxu0 0
        %2815 = vmatpush2.bf16.msra.mxu0 0
        %2816 = vmatprep.subr.bf16.mxu0 0
        %2817 = vmatpush2.bf16.msra.mxu0 0
        %2818 = vmatprep.subr.bf16.mxu0 0
        %2819 = vmatpush2.bf16.msra.mxu0 0
        %2820 = vmatprep.subr.bf16.mxu0 0
        %2821 = vmatpush2.bf16.msra.mxu0 0
        %2822 = vmatprep.subr.bf16.mxu0 0
        %2823 = vmatpush2.bf16.msra.mxu0 0
        %2824 = vmatprep.subr.bf16.mxu0 0
        %2825 = vmatpush2.bf16.msra.mxu0 0
        %2826 = vmatprep.subr.bf16.mxu0 0
        %2827 = vmatpush2.bf16.msra.mxu0 0
        %2828 = vmatprep.mubr.bf16.mxu0 0
        %2829 = vmatmul.mubr.bf16.gmra.mxu0 %v1861
        %v2830 = vpop.f32.mrf.mxu0
        %v2831 = vadd.f32 %v2013, %v2830
        %v2832 = vpop.f32.mrf.mxu0
        %v2833 = vadd.f32 %v2017, %v2832
        %v2834 = vpop.f32.mrf.mxu0
        %v2835 = vpop.f32.mrf.mxu0
        %2836 = vdwg.mxu0
        %2837 = vmatprep.subr.bf16.mxu0 %v2577
        %2838 = vmatpush1.bf16.msra.mxu0 %v2576
        %2839 = vmatprep.subr.bf16.mxu0 %v2561
        %2840 = vmatpush1.bf16.msra.mxu0 %v2560
        %2841 = vmatprep.subr.bf16.mxu0 %v2545
        %2842 = vmatpush1.bf16.msra.mxu0 %v2544
        %2843 = vmatprep.subr.bf16.mxu0 %v2529
        %2844 = vmatpush1.bf16.msra.mxu0 %v2528
        %2845 = vmatprep.subr.bf16.mxu0 %v2513
        %2846 = vmatpush1.bf16.msra.mxu0 %v2512
        %2847 = vmatprep.subr.bf16.mxu0 %v2497
        %2848 = vmatpush1.bf16.msra.mxu0 %v2496
        %2849 = vmatprep.subr.bf16.mxu0 %v2481
        %2850 = vmatpush1.bf16.msra.mxu0 %v2480
        %2851 = vmatprep.subr.bf16.mxu0 %v2465
        %2852 = vmatpush1.bf16.msra.mxu0 %v2464
        %2853 = vmatprep.subr.bf16.mxu0 0
        %2854 = vmatpush2.bf16.msra.mxu0 0
        %2855 = vmatprep.subr.bf16.mxu0 0
        %2856 = vmatpush2.bf16.msra.mxu0 0
        %2857 = vmatprep.subr.bf16.mxu0 0
        %2858 = vmatpush2.bf16.msra.mxu0 0
        %2859 = vmatprep.subr.bf16.mxu0 0
        %2860 = vmatpush2.bf16.msra.mxu0 0
        %2861 = vmatprep.subr.bf16.mxu0 0
        %2862 = vmatpush2.bf16.msra.mxu0 0
        %2863 = vmatprep.subr.bf16.mxu0 0
        %2864 = vmatpush2.bf16.msra.mxu0 0
        %2865 = vmatprep.subr.bf16.mxu0 0
        %2866 = vmatpush2.bf16.msra.mxu0 0
        %2867 = vmatprep.subr.bf16.mxu0 0
        %2868 = vmatpush2.bf16.msra.mxu0 0
        %2869 = vmatprep.mubr.bf16.mxu0 0
        %2870 = vmatmul.mubr.bf16.gmra.mxu0 %v1861
        %v2871 = vpop.f32.mrf.mxu0
        %v2872 = vadd.f32 %v2021, %v2871
        %v2873 = vpop.f32.mrf.mxu0
        %v2874 = vadd.f32 %v2025, %v2873
        %v2875 = vpop.f32.mrf.mxu0
        %v2876 = vpop.f32.mrf.mxu0
        %2877 = vdwg.mxu0
        %2878 = vmatprep.subr.bf16.mxu0 %v2579
        %2879 = vmatpush1.bf16.msra.mxu0 %v2578
        %2880 = vmatprep.subr.bf16.mxu0 %v2563
        %2881 = vmatpush1.bf16.msra.mxu0 %v2562
        %2882 = vmatprep.subr.bf16.mxu0 %v2547
        %2883 = vmatpush1.bf16.msra.mxu0 %v2546
        %2884 = vmatprep.subr.bf16.mxu0 %v2531
        %2885 = vmatpush1.bf16.msra.mxu0 %v2530
        %2886 = vmatprep.subr.bf16.mxu0 %v2515
        %2887 = vmatpush1.bf16.msra.mxu0 %v2514
        %2888 = vmatprep.subr.bf16.mxu0 %v2499
        %2889 = vmatpush1.bf16.msra.mxu0 %v2498
        %2890 = vmatprep.subr.bf16.mxu0 %v2483
        %2891 = vmatpush1.bf16.msra.mxu0 %v2482
        %2892 = vmatprep.subr.bf16.mxu0 %v2467
        %2893 = vmatpush1.bf16.msra.mxu0 %v2466
        %2894 = vmatprep.subr.bf16.mxu0 0
        %2895 = vmatpush2.bf16.msra.mxu0 0
        %2896 = vmatprep.subr.bf16.mxu0 0
        %2897 = vmatpush2.bf16.msra.mxu0 0
        %2898 = vmatprep.subr.bf16.mxu0 0
        %2899 = vmatpush2.bf16.msra.mxu0 0
        %2900 = vmatprep.subr.bf16.mxu0 0
        %2901 = vmatpush2.bf16.msra.mxu0 0
        %2902 = vmatprep.subr.bf16.mxu0 0
        %2903 = vmatpush2.bf16.msra.mxu0 0
        %2904 = vmatprep.subr.bf16.mxu0 0
        %2905 = vmatpush2.bf16.msra.mxu0 0
        %2906 = vmatprep.subr.bf16.mxu0 0
        %2907 = vmatpush2.bf16.msra.mxu0 0
        %2908 = vmatprep.subr.bf16.mxu0 0
        %2909 = vmatpush2.bf16.msra.mxu0 0
        %2910 = vmatprep.mubr.bf16.mxu0 0
        %2911 = vmatmul.mubr.bf16.gmra.mxu0 %v1861
        %v2912 = vpop.f32.mrf.mxu0
        %v2913 = vadd.f32 %v2029, %v2912
        %v2914 = vpop.f32.mrf.mxu0
        %v2915 = vadd.f32 %v2033, %v2914
        %v2916 = vpop.f32.mrf.mxu0
        %v2917 = vpop.f32.mrf.mxu0
        %2918 = vdwg.mxu0
        %2919 = vmatprep.subr.bf16.mxu0 %v2581
        %2920 = vmatpush1.bf16.msra.mxu0 %v2580
        %2921 = vmatprep.subr.bf16.mxu0 %v2565
        %2922 = vmatpush1.bf16.msra.mxu0 %v2564
        %2923 = vmatprep.subr.bf16.mxu0 %v2549
        %2924 = vmatpush1.bf16.msra.mxu0 %v2548
        %2925 = vmatprep.subr.bf16.mxu0 %v2533
        %2926 = vmatpush1.bf16.msra.mxu0 %v2532
        %2927 = vmatprep.subr.bf16.mxu0 %v2517
        %2928 = vmatpush1.bf16.msra.mxu0 %v2516
        %2929 = vmatprep.subr.bf16.mxu0 %v2501
        %2930 = vmatpush1.bf16.msra.mxu0 %v2500
        %2931 = vmatprep.subr.bf16.mxu0 %v2485
        %2932 = vmatpush1.bf16.msra.mxu0 %v2484
        %2933 = vmatprep.subr.bf16.mxu0 %v2469
        %2934 = vmatpush1.bf16.msra.mxu0 %v2468
        %2935 = vmatprep.subr.bf16.mxu0 0
        %2936 = vmatpush2.bf16.msra.mxu0 0
        %2937 = vmatprep.subr.bf16.mxu0 0
        %2938 = vmatpush2.bf16.msra.mxu0 0
        %2939 = vmatprep.subr.bf16.mxu0 0
        %2940 = vmatpush2.bf16.msra.mxu0 0
        %2941 = vmatprep.subr.bf16.mxu0 0
        %2942 = vmatpush2.bf16.msra.mxu0 0
        %2943 = vmatprep.subr.bf16.mxu0 0
        %2944 = vmatpush2.bf16.msra.mxu0 0
        %2945 = vmatprep.subr.bf16.mxu0 0
        %2946 = vmatpush2.bf16.msra.mxu0 0
        %2947 = vmatprep.subr.bf16.mxu0 0
        %2948 = vmatpush2.bf16.msra.mxu0 0
        %2949 = vmatprep.subr.bf16.mxu0 0
        %2950 = vmatpush2.bf16.msra.mxu0 0
        %2951 = vmatprep.mubr.bf16.mxu0 0
        %2952 = vmatmul.mubr.bf16.gmra.mxu0 %v1861
        %v2953 = vpop.f32.mrf.mxu0
        %v2954 = vadd.f32 %v2037, %v2953
        %v2955 = vpop.f32.mrf.mxu0
        %v2956 = vadd.f32 %v2041, %v2955
        %v2957 = vpop.f32.mrf.mxu0
        %v2958 = vpop.f32.mrf.mxu0
        %2959 = vdwg.mxu0
        %2960 = vmatprep.subr.bf16.mxu0 %v2583
        %2961 = vmatpush1.bf16.msra.mxu0 %v2582
        %2962 = vmatprep.subr.bf16.mxu0 %v2567
        %2963 = vmatpush1.bf16.msra.mxu0 %v2566
        %2964 = vmatprep.subr.bf16.mxu0 %v2551
        %2965 = vmatpush1.bf16.msra.mxu0 %v2550
        %2966 = vmatprep.subr.bf16.mxu0 %v2535
        %2967 = vmatpush1.bf16.msra.mxu0 %v2534
        %2968 = vmatprep.subr.bf16.mxu0 %v2519
        %2969 = vmatpush1.bf16.msra.mxu0 %v2518
        %2970 = vmatprep.subr.bf16.mxu0 %v2503
        %2971 = vmatpush1.bf16.msra.mxu0 %v2502
        %2972 = vmatprep.subr.bf16.mxu0 %v2487
        %2973 = vmatpush1.bf16.msra.mxu0 %v2486
        %2974 = vmatprep.subr.bf16.mxu0 %v2471
        %2975 = vmatpush1.bf16.msra.mxu0 %v2470
        %2976 = vmatprep.subr.bf16.mxu0 0
        %2977 = vmatpush2.bf16.msra.mxu0 0
        %2978 = vmatprep.subr.bf16.mxu0 0
        %2979 = vmatpush2.bf16.msra.mxu0 0
        %2980 = vmatprep.subr.bf16.mxu0 0
        %2981 = vmatpush2.bf16.msra.mxu0 0
        %2982 = vmatprep.subr.bf16.mxu0 0
        %2983 = vmatpush2.bf16.msra.mxu0 0
        %2984 = vmatprep.subr.bf16.mxu0 0
        %2985 = vmatpush2.bf16.msra.mxu0 0
        %2986 = vmatprep.subr.bf16.mxu0 0
        %2987 = vmatpush2.bf16.msra.mxu0 0
        %2988 = vmatprep.subr.bf16.mxu0 0
        %2989 = vmatpush2.bf16.msra.mxu0 0
        %2990 = vmatprep.subr.bf16.mxu0 0
        %2991 = vmatpush2.bf16.msra.mxu0 0
        %2992 = vmatprep.mubr.bf16.mxu0 0
        %2993 = vmatmul.mubr.bf16.gmra.mxu0 %v1861
        %v2994 = vpop.f32.mrf.mxu0
        %v2995 = vadd.f32 %v2045, %v2994
        %v2996 = vpop.f32.mrf.mxu0
        %v2997 = vadd.f32 %v2049, %v2996
        %v2998 = vpop.f32.mrf.mxu0
        %v2999 = vpop.f32.mrf.mxu0
        %3000 = vdwg.mxu0
        %3001 = vmatprep.subr.bf16.mxu0 %v2585
        %3002 = vmatpush1.bf16.msra.mxu0 %v2584
        %3003 = vmatprep.subr.bf16.mxu0 %v2569
        %3004 = vmatpush1.bf16.msra.mxu0 %v2568
        %3005 = vmatprep.subr.bf16.mxu0 %v2553
        %3006 = vmatpush1.bf16.msra.mxu0 %v2552
        %3007 = vmatprep.subr.bf16.mxu0 %v2537
        %3008 = vmatpush1.bf16.msra.mxu0 %v2536
        %3009 = vmatprep.subr.bf16.mxu0 %v2521
        %3010 = vmatpush1.bf16.msra.mxu0 %v2520
        %3011 = vmatprep.subr.bf16.mxu0 %v2505
        %3012 = vmatpush1.bf16.msra.mxu0 %v2504
        %3013 = vmatprep.subr.bf16.mxu0 %v2489
        %3014 = vmatpush1.bf16.msra.mxu0 %v2488
        %3015 = vmatprep.subr.bf16.mxu0 %v2473
        %3016 = vmatpush1.bf16.msra.mxu0 %v2472
        %3017 = vmatprep.subr.bf16.mxu0 0
        %3018 = vmatpush2.bf16.msra.mxu0 0
        %3019 = vmatprep.subr.bf16.mxu0 0
        %3020 = vmatpush2.bf16.msra.mxu0 0
        %3021 = vmatprep.subr.bf16.mxu0 0
        %3022 = vmatpush2.bf16.msra.mxu0 0
        %3023 = vmatprep.subr.bf16.mxu0 0
        %3024 = vmatpush2.bf16.msra.mxu0 0
        %3025 = vmatprep.subr.bf16.mxu0 0
        %3026 = vmatpush2.bf16.msra.mxu0 0
        %3027 = vmatprep.subr.bf16.mxu0 0
        %3028 = vmatpush2.bf16.msra.mxu0 0
        %3029 = vmatprep.subr.bf16.mxu0 0
        %3030 = vmatpush2.bf16.msra.mxu0 0
        %3031 = vmatprep.subr.bf16.mxu0 0
        %3032 = vmatpush2.bf16.msra.mxu0 0
        %3033 = vmatprep.mubr.bf16.mxu0 0
        %3034 = vmatmul.mubr.bf16.gmra.mxu0 %v1861
        %v3035 = vpop.f32.mrf.mxu0
        %v3036 = vadd.f32 %v2053, %v3035
        %v3037 = vpop.f32.mrf.mxu0
        %v3038 = vadd.f32 %v2057, %v3037
        %v3039 = vpop.f32.mrf.mxu0
        %v3040 = vpop.f32.mrf.mxu0
        %3041 = vdwg.mxu0
        %3042 = vst [vmem:[%s405] sm:$0xff] %v2749
        %3043 = vst [vmem:[%s405 + $0x8] sm:$0xff] %v2751
        %3044 = vst [vmem:[%s405 + $0x10] sm:$0xff] %v2790
        %3045 = vst [vmem:[%s405 + $0x18] sm:$0xff] %v2792
        %3046 = vst [vmem:[%s405 + $0x20] sm:$0xff] %v2831
        %3047 = vst [vmem:[%s405 + $0x28] sm:$0xff] %v2833
        %3048 = vst [vmem:[%s405 + $0x30] sm:$0xff] %v2872
        %3049 = vst [vmem:[%s405 + $0x38] sm:$0xff] %v2874
        %3050 = vst [vmem:[%s405 + $0x40] sm:$0xff] %v2913
        %3051 = vst [vmem:[%s405 + $0x48] sm:$0xff] %v2915
        %3052 = vst [vmem:[%s405 + $0x50] sm:$0xff] %v2954
        %3053 = vst [vmem:[%s405 + $0x58] sm:$0xff] %v2956
        %3054 = vst [vmem:[%s405 + $0x60] sm:$0xff] %v2995
        %3055 = vst [vmem:[%s405 + $0x68] sm:$0xff] %v2997
        %3056 = vst [vmem:[%s405 + $0x70] sm:$0xff] %v3036
        %3057 = vst [vmem:[%s405 + $0x78] sm:$0xff] %v3038
        %s3058 = smul.u32 16, %s26
        %p3059 = scmp.lt.s32.totalorder %s25, 1
        %s3060 = scalar_select %p3059, %s25, 1
        %p3061 = scmp.lt.s32.totalorder %s3058, 15
        %s3062 = scalar_select %p3061, %s3058, 15
        %s3063 = smul.addr %s3060, 16
        %s3064 = sadd.s32 %s3062, %s3063
        %s3065 = smul.addr %s3064, 8
        %s3066 = scalar_lea.vmem %s8, %s3065
        // Predicated region
        $region65: #{_forward_impl.1} parent=51 // pred_check
          %p3067 = pneg %p241
        $region66: #{_forward_impl.1} parent=51 // pred_check_branch
          %3069 = sbr.rel (%p3067) target = $region68
        $region67: #{_forward_impl.1} parent=51 // pred_region
          %s3070 = smul.u32 16, %s26
        $region68: #{_forward_impl.1} parent=51 // pred_fallthru
          _
      $region52: #{_forward_impl.1} parent=5 // pred_fallthru
        _
      %p3071 = scmp.le.s32.totalorder 2, %s16
      // Predicated region
      $region69: #{_forward_impl.1} parent=5 // pred_check
        %p3072 = pneg %p3071
      $region70: #{_forward_impl.1} parent=5 // pred_check_branch
        %3074 = sbr.rel (%p3072) target = $region72
      $region71: #{_forward_impl.1} parent=5 // pred_region
        %s3075 = ssub.s32 %s16, 2
        // Predicated region
        $region73: #{_forward_impl.1} parent=71 // pred_check
          %p3076 = pneg %p247
        $region74: #{_forward_impl.1} parent=71 // pred_check_branch
          %3078 = sbr.rel (%p3076) target = $region76
        $region75: #{_forward_impl.1} parent=71 // pred_region
          %s3079 = smul.u32 16, %s28
          %p3080 = scmp.lt.s32.totalorder %s27, 1
          %s3081 = scalar_select %p3080, %s27, 1
          %p3082 = scmp.lt.s32.totalorder %s3079, 15
          %s3083 = scalar_select %p3082, %s3079, 15
          %s3084 = smul.addr %s3081, 16
          %s3085 = sadd.s32 %s3083, %s3084
          %s3086 = smul.addr %s3085, 8
          %s3087 = scalar_lea.vmem %s8, %s3086
        $region76: #{_forward_impl.1} parent=71 // pred_fallthru
          _
      $region72: #{_forward_impl.1} parent=5 // pred_fallthru
        _
    $region6: #{_forward_impl.1} parent=1 // loop_footer
      %s20 = sadd.s32 1, %s16
    $region7: #{_forward_impl.1} parent=1 // loop_footer_branch
      %15 = sbr.rel target = $region3
    $region8: #{_forward_impl.1} parent=1 // loop_exit
      _
    %3088 = vsyncpa [#allocation4], 1
    %s3089 = scalar_lea.sflag [#allocation4], 1
    %3090 = vsyncpa %s3089, 1
    %3091 = vsyncpa [#allocation6], 1

</llo_original>
